<compile_context>
chip_gen: v7x
topology: tpu7x:2x2x1
jax: 0.10.0
libtpu: 0.0.40
codegen_flags: <defaults>
</compile_context>

<pallas_src>
import functools

import jax
import jax.numpy as jnp
from jax.experimental import pallas as pl
from jax.experimental.pallas import tpu as pltpu


# TODO(synk): torch nn.GELU() defaults to the exact erf form; the tanh approximation
# is used here (and in the reference) for guaranteed Mosaic lowering (~1e-3 max dev).
def _gelu_tanh(x):
    c = 0.7978845608028654  # sqrt(2/pi)
    return 0.5 * x * (1.0 + jnp.tanh(c * (x + 0.044715 * x * x * x)))


def _layernorm(x, gamma, beta, eps=1e-5):
    mu = jnp.mean(x, axis=-1, keepdims=True)
    xc = x - mu
    var = jnp.mean(xc * xc, axis=-1, keepdims=True)
    return xc * jax.lax.rsqrt(var + eps) * gamma + beta


def _block_kernel(B, N, H, D, approx_recip,
                  x_ref, g1_ref, be1_ref, wqkv_ref, bqkv_ref, wp_ref, bp_ref,
                  g2_ref, be2_ref, w1_ref, bf1_ref, w2_ref, bf2_ref, o_ref):
    f32, bf16 = jnp.float32, jnp.bfloat16
    C = H * D
    M = B * N
    G = B * H

    x = x_ref[...].astype(f32)                                   # (M, C) token-major

    # ---- LayerNorm 1 (f32, VPU) ----
    h = _layernorm(x, g1_ref[...], be1_ref[...])

    # ---- Fused QKV projection: one MXU matmul, attention scale folded into Q cols ----
    qkv = jnp.dot(h.astype(bf16), wqkv_ref[...],
                  preferred_element_type=f32) + bqkv_ref[...]     # (M, 3C)
    q = qkv[:, 0 * C:1 * C]
    k = qkv[:, 1 * C:2 * C]
    v = qkv[:, 2 * C:3 * C]

    # ---- Regroup heads into a (B*H, N, D) batch.  Only static lane slices and
    #      leading-dim splits/merges are used (no lane/sublane transposes). ----
    def to_heads(t):                                              # (M, C) -> (G, N, D)
        parts = [t[:, hh * D:(hh + 1) * D].reshape(B, 1, N, D) for hh in range(H)]
        return jnp.concatenate(parts, axis=1).reshape(G, N, D)

    qg = to_heads(q).astype(bf16)
    kg = to_heads(k).astype(bf16)
    vg = to_heads(v).astype(bf16)

    # ---- Attention core, batched over all (b, h) pairs ----
    s = jnp.einsum('gnd,gmd->gnm', qg, kg, preferred_element_type=f32)   # (G, N, N)
    s = s - jnp.max(s, axis=-1, keepdims=True)                    # stable softmax
    p = jnp.exp(s)
    denom = jnp.sum(p, axis=-1, keepdims=True)                    # (G, N, 1)
    pv = jnp.einsum('gnm,gmd->gnd', p.astype(bf16), vg,
                    preferred_element_type=f32)                   # (G, N, D)
    if approx_recip:
        pv = pv * pl.reciprocal(denom, approx=True)               # deferred norm (EUP)
    else:
        pv = pv / denom                                           # exact path (flagged)

    # ---- Back to token-major (M, C); ONE projection matmul contracting all C = H*D
    #      columns -> head-sum accumulates inside the MXU. ----
    pv4 = pv.reshape(B, H, N, D)
    attn_cat = jnp.concatenate([pv4[:, hh].reshape(M, D) for hh in range(H)],
                               axis=-1)                           # (M, C)
    attn_out = jnp.dot(attn_cat.astype(bf16), wp_ref[...],
                       preferred_element_type=f32) + bp_ref[...]  # (M, C)
    x = x + attn_out                                              # residual 1

    # ---- LayerNorm 2 + MLP ----
    h2 = _layernorm(x, g2_ref[...], be2_ref[...])
    z = jnp.dot(h2.astype(bf16), w1_ref[...],
                preferred_element_type=f32) + bf1_ref[...]        # (M, Hid)
    z = _gelu_tanh(z)
    m = jnp.dot(z.astype(bf16), w2_ref[...],
                preferred_element_type=f32) + bf2_ref[...]        # (M, C)

    o_ref[...] = (x + m).astype(o_ref.dtype)                      # one dense slab store


def block_forward(x, gamma1, beta1, w_qkv, b_qkv, w_proj, b_proj,
                  gamma2, beta2, w_fc1, b_fc1, w_fc2, b_fc2, num_heads,
                  approx_reciprocal=True):
    """x: (B, N, C). Weights in torch layout: w_qkv (3C, C), w_proj (C, C),
    w_fc1 (Hid, C), w_fc2 (C, Hid)."""
    B, N, C = x.shape
    H = num_heads
    D = C // H
    Hid = w_fc1.shape[0]
    M = B * N
    scale = D ** (-0.5)
    f32, bf16 = jnp.float32, jnp.bfloat16

    # --- fused QKV weight (C, 3C); attention scale folded into the Q block (free) ---
    wq_t = w_qkv[0 * C:1 * C].T * scale            # (C_in, C_out), out col = h*D + d
    wk_t = w_qkv[1 * C:2 * C].T
    wv_t = w_qkv[2 * C:3 * C].T
    w_qkv_t = jnp.concatenate([wq_t, wk_t, wv_t], axis=1).astype(bf16)     # (C, 3C)
    b_qkv_s = jnp.concatenate([b_qkv[:C] * scale, b_qkv[C:]]
                              ).reshape(1, 3 * C).astype(f32)              # (1, 3C)

    wp_t = w_proj.T.astype(bf16)                   # (C, C); rows = h*D + d, matches attn_cat
    bp2 = b_proj.reshape(1, C).astype(f32)
    w1_t = w_fc1.T.astype(bf16)                    # (C, Hid)
    b1_2 = b_fc1.reshape(1, Hid).astype(f32)
    w2_t = w_fc2.T.astype(bf16)                    # (Hid, C)
    b2_2 = b_fc2.reshape(1, C).astype(f32)

    g1 = gamma1.reshape(1, C).astype(f32)
    be1 = beta1.reshape(1, C).astype(f32)
    g2 = gamma2.reshape(1, C).astype(f32)
    be2 = beta2.reshape(1, C).astype(f32)

    x_flat = x.reshape(M, C)                       # batch folded into the token axis

    kernel = functools.partial(_block_kernel, B, N, H, D, approx_reciprocal)

    # No grid: one fused step; every operand lives fully (and single-buffered) in VMEM.
    vmem = pl.BlockSpec(memory_space=pltpu.MemorySpace.VMEM)
    out_flat = pl.pallas_call(
        kernel,
        out_shape=jax.ShapeDtypeStruct((M, C), x.dtype),
        in_specs=[vmem] * 13,
        out_specs=vmem,
    )(x_flat, g1, be1, w_qkv_t, b_qkv_s, wp_t, bp2, g2, be2, w1_t, b1_2, w2_t, b2_2)

    return out_flat.reshape(B, N, C)


def block_reference(x, gamma1, beta1, w_qkv, b_qkv, w_proj, b_proj,
                    gamma2, beta2, w_fc1, b_fc1, w_fc2, b_fc2, num_heads):
    """Pure-JAX f32 replica of the PyTorch Block forward."""
    B, N, C = x.shape
    D = C // num_heads

    def ln(t, g, b, eps=1e-5):
        mu = t.mean(-1, keepdims=True)
        var = ((t - mu) ** 2).mean(-1, keepdims=True)
        return (t - mu) / jnp.sqrt(var + eps) * g + b

    h = ln(x, gamma1, beta1)
    qkv = h @ w_qkv.T + b_qkv                                    # (B, N, 3C)
    qkv = qkv.reshape(B, N, 3, num_heads, D).transpose(2, 0, 3, 1, 4)
    q, k, v = qkv[0], qkv[1], qkv[2]                             # (B, H, N, D)
    attn = (q @ k.transpose(0, 1, 3, 2)) * (D ** (-0.5))
    attn = jax.nn.softmax(attn, axis=-1)
    a = (attn @ v).transpose(0, 2, 1, 3).reshape(B, N, C)
    x = x + (a @ w_proj.T + b_proj)

    h2 = ln(x, gamma2, beta2)
    z = _gelu_tanh(h2 @ w_fc1.T + b_fc1)
    x = x + (z @ w_fc2.T + b_fc2)
    return x


if __name__ == "__main__":
    # Small shapes consistent with the module: B=2, N=16 tokens, C=32 channels,
    # 8 heads, mlp_ratio=4.
    B, N, C, H = 2, 16, 32, 8
    Hid = int(C * 4.0)

    key = jax.random.PRNGKey(0)
    ks = jax.random.split(key, 13)

    x = jax.random.normal(ks[0], (B, N, C), dtype=jnp.float32)
    gamma1 = 1.0 + 0.1 * jax.random.normal(ks[1], (C,), dtype=jnp.float32)
    beta1 = 0.05 * jax.random.normal(ks[2], (C,), dtype=jnp.float32)
    w_qkv = jax.random.normal(ks[3], (3 * C, C), dtype=jnp.float32) / jnp.sqrt(C)
    b_qkv = 0.02 * jax.random.normal(ks[4], (3 * C,), dtype=jnp.float32)
    w_proj = jax.random.normal(ks[5], (C, C), dtype=jnp.float32) / jnp.sqrt(C)
    b_proj = 0.02 * jax.random.normal(ks[6], (C,), dtype=jnp.float32)
    gamma2 = 1.0 + 0.1 * jax.random.normal(ks[7], (C,), dtype=jnp.float32)
    beta2 = 0.05 * jax.random.normal(ks[8], (C,), dtype=jnp.float32)
    w_fc1 = jax.random.normal(ks[9], (Hid, C), dtype=jnp.float32) / jnp.sqrt(C)
    b_fc1 = 0.02 * jax.random.normal(ks[10], (Hid,), dtype=jnp.float32)
    w_fc2 = jax.random.normal(ks[11], (C, Hid), dtype=jnp.float32) / jnp.sqrt(Hid)
    b_fc2 = 0.02 * jax.random.normal(ks[12], (C,), dtype=jnp.float32)

    out = block_forward(x, gamma1, beta1, w_qkv, b_qkv, w_proj, b_proj,
                        gamma2, beta2, w_fc1, b_fc1, w_fc2, b_fc2, num_heads=H)
    out = jax.block_until_ready(out)

    ref = block_reference(x, gamma1, beta1, w_qkv, b_qkv, w_proj, b_proj,
                          gamma2, beta2, w_fc1, b_fc1, w_fc2, b_fc2, num_heads=H)
    ref = jax.block_until_ready(ref)

    assert out.shape == (B, N, C)
    # bf16 MXU operands (f32 accumulation) + approx reciprocal -> loosened tolerance
    # vs. the f32 reference.
    assert jnp.allclose(out, ref, atol=5e-2, rtol=5e-2), \
        f"Pallas kernel mismatch vs reference (max abs err {jnp.max(jnp.abs(out - ref))})"

    print("KERNEL_OK")
</pallas_src>

<mosaic_0001>
module attributes {stable_mosaic.version = 11 : i64} {
  func.func @_block_kernel(%arg0: memref<32x32xf32, #tpu.memory_space<vmem>>, %arg1: memref<1x32xf32, #tpu.memory_space<vmem>>, %arg2: memref<1x32xf32, #tpu.memory_space<vmem>>, %arg3: memref<32x96xbf16, #tpu.memory_space<vmem>>, %arg4: memref<1x96xf32, #tpu.memory_space<vmem>>, %arg5: memref<32x32xbf16, #tpu.memory_space<vmem>>, %arg6: memref<1x32xf32, #tpu.memory_space<vmem>>, %arg7: memref<1x32xf32, #tpu.memory_space<vmem>>, %arg8: memref<1x32xf32, #tpu.memory_space<vmem>>, %arg9: memref<32x128xbf16, #tpu.memory_space<vmem>>, %arg10: memref<1x128xf32, #tpu.memory_space<vmem>>, %arg11: memref<128x32xbf16, #tpu.memory_space<vmem>>, %arg12: memref<1x32xf32, #tpu.memory_space<vmem>>, %arg13: memref<32x32xf32, #tpu.memory_space<vmem>>) attributes {dimension_semantics = [], scalar_prefetch = 0 : i64, scratch_operands = 0 : i64, tpu.core_type = #tpu.core_type<tc>} {
    %c0 = arith.constant 0 : index
    %c0_0 = arith.constant 0 : index
    %0 = vector.load %arg0[%c0, %c0_0] : memref<32x32xf32, #tpu.memory_space<vmem>>, vector<32x32xf32>
    %c0_1 = arith.constant 0 : index
    %c0_2 = arith.constant 0 : index
    %1 = vector.load %arg1[%c0_1, %c0_2] : memref<1x32xf32, #tpu.memory_space<vmem>>, vector<1x32xf32>
    %c0_3 = arith.constant 0 : index
    %c0_4 = arith.constant 0 : index
    %2 = vector.load %arg2[%c0_3, %c0_4] : memref<1x32xf32, #tpu.memory_space<vmem>>, vector<1x32xf32>
    %cst = arith.constant dense<0.000000e+00> : vector<32xf32>
    %3 = vector.multi_reduction <add>, %0, %cst [1] : vector<32x32xf32> to vector<32xf32>
    %4 = vector.shape_cast %3 : vector<32xf32> to vector<32x1xf32>
    %cst_5 = arith.constant 3.200000e+01 : f32
    %5 = vector.broadcast %cst_5 : f32 to vector<32x1xf32>
    %6 = arith.divf %4, %5 : vector<32x1xf32>
    %7 = vector.broadcast %6 : vector<32x1xf32> to vector<32x32xf32>
    %8 = arith.subf %0, %7 : vector<32x32xf32>
    %9 = arith.mulf %8, %8 : vector<32x32xf32>
    %cst_6 = arith.constant dense<0.000000e+00> : vector<32xf32>
    %10 = vector.multi_reduction <add>, %9, %cst_6 [1] : vector<32x32xf32> to vector<32xf32>
    %11 = vector.shape_cast %10 : vector<32xf32> to vector<32x1xf32>
    %cst_7 = arith.constant 3.200000e+01 : f32
    %12 = vector.broadcast %cst_7 : f32 to vector<32x1xf32>
    %13 = arith.divf %11, %12 : vector<32x1xf32>
    %cst_8 = arith.constant 9.99999974E-6 : f32
    %14 = vector.broadcast %cst_8 : f32 to vector<32x1xf32>
    %15 = arith.addf %13, %14 : vector<32x1xf32>
    %16 = math.rsqrt %15 : vector<32x1xf32>
    %17 = vector.broadcast %16 : vector<32x1xf32> to vector<32x32xf32>
    %18 = arith.mulf %8, %17 : vector<32x32xf32>
    %19 = vector.broadcast %1 : vector<1x32xf32> to vector<32x32xf32>
    %20 = arith.mulf %18, %19 : vector<32x32xf32>
    %21 = vector.broadcast %2 : vector<1x32xf32> to vector<32x32xf32>
    %22 = arith.addf %20, %21 : vector<32x32xf32>
    %23 = arith.truncf %22 : vector<32x32xf32> to vector<32x32xbf16>
    %c0_9 = arith.constant 0 : index
    %c0_10 = arith.constant 0 : index
    %24 = vector.load %arg3[%c0_9, %c0_10] : memref<32x96xbf16, #tpu.memory_space<vmem>>, vector<32x96xbf16>
    %cst_11 = arith.constant dense<0.000000e+00> : vector<32x96xf32>
    %25 = tpu.matmul %23, %24, %cst_11 {dimension_numbers = #tpu.dot_dimension_numbers<[1], [0], [0], [1], [0, 0, 1, 1], [], []>} : vector<32x32xbf16>, vector<32x96xbf16>, vector<32x96xf32> -> vector<32x96xf32>
    %c0_12 = arith.constant 0 : index
    %c0_13 = arith.constant 0 : index
    %26 = vector.load %arg4[%c0_12, %c0_13] : memref<1x96xf32, #tpu.memory_space<vmem>>, vector<1x96xf32>
    %27 = vector.broadcast %26 : vector<1x96xf32> to vector<32x96xf32>
    %28 = arith.addf %25, %27 : vector<32x96xf32>
    %29 = vector.extract_strided_slice %28 {offsets = [0, 0], sizes = [32, 32], strides = [1, 1]} : vector<32x96xf32> to vector<32x32xf32>
    %30 = vector.extract_strided_slice %28 {offsets = [0, 32], sizes = [32, 32], strides = [1, 1]} : vector<32x96xf32> to vector<32x32xf32>
    %31 = vector.extract_strided_slice %28 {offsets = [0, 64], sizes = [32, 32], strides = [1, 1]} : vector<32x96xf32> to vector<32x32xf32>
    %32 = vector.extract_strided_slice %29 {offsets = [0, 0], sizes = [32, 4], strides = [1, 1]} : vector<32x32xf32> to vector<32x4xf32>
    %33 = vector.shape_cast %32 : vector<32x4xf32> to vector<2x1x16x4xf32>
    %34 = vector.extract_strided_slice %29 {offsets = [0, 4], sizes = [32, 4], strides = [1, 1]} : vector<32x32xf32> to vector<32x4xf32>
    %35 = vector.shape_cast %34 : vector<32x4xf32> to vector<2x1x16x4xf32>
    %36 = vector.extract_strided_slice %29 {offsets = [0, 8], sizes = [32, 4], strides = [1, 1]} : vector<32x32xf32> to vector<32x4xf32>
    %37 = vector.shape_cast %36 : vector<32x4xf32> to vector<2x1x16x4xf32>
    %38 = vector.extract_strided_slice %29 {offsets = [0, 12], sizes = [32, 4], strides = [1, 1]} : vector<32x32xf32> to vector<32x4xf32>
    %39 = vector.shape_cast %38 : vector<32x4xf32> to vector<2x1x16x4xf32>
    %40 = vector.extract_strided_slice %29 {offsets = [0, 16], sizes = [32, 4], strides = [1, 1]} : vector<32x32xf32> to vector<32x4xf32>
    %41 = vector.shape_cast %40 : vector<32x4xf32> to vector<2x1x16x4xf32>
    %42 = vector.extract_strided_slice %29 {offsets = [0, 20], sizes = [32, 4], strides = [1, 1]} : vector<32x32xf32> to vector<32x4xf32>
    %43 = vector.shape_cast %42 : vector<32x4xf32> to vector<2x1x16x4xf32>
    %44 = vector.extract_strided_slice %29 {offsets = [0, 24], sizes = [32, 4], strides = [1, 1]} : vector<32x32xf32> to vector<32x4xf32>
    %45 = vector.shape_cast %44 : vector<32x4xf32> to vector<2x1x16x4xf32>
    %46 = vector.extract_strided_slice %29 {offsets = [0, 28], sizes = [32, 4], strides = [1, 1]} : vector<32x32xf32> to vector<32x4xf32>
    %47 = vector.shape_cast %46 : vector<32x4xf32> to vector<2x1x16x4xf32>
    %48 = tpu.concatenate %33, %35, %37, %39, %41, %43, %45, %47 in 1 : vector<2x1x16x4xf32>, vector<2x1x16x4xf32>, vector<2x1x16x4xf32>, vector<2x1x16x4xf32>, vector<2x1x16x4xf32>, vector<2x1x16x4xf32>, vector<2x1x16x4xf32>, vector<2x1x16x4xf32> -> vector<2x8x16x4xf32>
    %49 = vector.shape_cast %48 : vector<2x8x16x4xf32> to vector<16x16x4xf32>
    %50 = arith.truncf %49 : vector<16x16x4xf32> to vector<16x16x4xbf16>
    %51 = vector.extract_strided_slice %30 {offsets = [0, 0], sizes = [32, 4], strides = [1, 1]} : vector<32x32xf32> to vector<32x4xf32>
    %52 = vector.shape_cast %51 : vector<32x4xf32> to vector<2x1x16x4xf32>
    %53 = vector.extract_strided_slice %30 {offsets = [0, 4], sizes = [32, 4], strides = [1, 1]} : vector<32x32xf32> to vector<32x4xf32>
    %54 = vector.shape_cast %53 : vector<32x4xf32> to vector<2x1x16x4xf32>
    %55 = vector.extract_strided_slice %30 {offsets = [0, 8], sizes = [32, 4], strides = [1, 1]} : vector<32x32xf32> to vector<32x4xf32>
    %56 = vector.shape_cast %55 : vector<32x4xf32> to vector<2x1x16x4xf32>
    %57 = vector.extract_strided_slice %30 {offsets = [0, 12], sizes = [32, 4], strides = [1, 1]} : vector<32x32xf32> to vector<32x4xf32>
    %58 = vector.shape_cast %57 : vector<32x4xf32> to vector<2x1x16x4xf32>
    %59 = vector.extract_strided_slice %30 {offsets = [0, 16], sizes = [32, 4], strides = [1, 1]} : vector<32x32xf32> to vector<32x4xf32>
    %60 = vector.shape_cast %59 : vector<32x4xf32> to vector<2x1x16x4xf32>
    %61 = vector.extract_strided_slice %30 {offsets = [0, 20], sizes = [32, 4], strides = [1, 1]} : vector<32x32xf32> to vector<32x4xf32>
    %62 = vector.shape_cast %61 : vector<32x4xf32> to vector<2x1x16x4xf32>
    %63 = vector.extract_strided_slice %30 {offsets = [0, 24], sizes = [32, 4], strides = [1, 1]} : vector<32x32xf32> to vector<32x4xf32>
    %64 = vector.shape_cast %63 : vector<32x4xf32> to vector<2x1x16x4xf32>
    %65 = vector.extract_strided_slice %30 {offsets = [0, 28], sizes = [32, 4], strides = [1, 1]} : vector<32x32xf32> to vector<32x4xf32>
    %66 = vector.shape_cast %65 : vector<32x4xf32> to vector<2x1x16x4xf32>
    %67 = tpu.concatenate %52, %54, %56, %58, %60, %62, %64, %66 in 1 : vector<2x1x16x4xf32>, vector<2x1x16x4xf32>, vector<2x1x16x4xf32>, vector<2x1x16x4xf32>, vector<2x1x16x4xf32>, vector<2x1x16x4xf32>, vector<2x1x16x4xf32>, vector<2x1x16x4xf32> -> vector<2x8x16x4xf32>
    %68 = vector.shape_cast %67 : vector<2x8x16x4xf32> to vector<16x16x4xf32>
    %69 = arith.truncf %68 : vector<16x16x4xf32> to vector<16x16x4xbf16>
    %70 = vector.extract_strided_slice %31 {offsets = [0, 0], sizes = [32, 4], strides = [1, 1]} : vector<32x32xf32> to vector<32x4xf32>
    %71 = vector.shape_cast %70 : vector<32x4xf32> to vector<2x1x16x4xf32>
    %72 = vector.extract_strided_slice %31 {offsets = [0, 4], sizes = [32, 4], strides = [1, 1]} : vector<32x32xf32> to vector<32x4xf32>
    %73 = vector.shape_cast %72 : vector<32x4xf32> to vector<2x1x16x4xf32>
    %74 = vector.extract_strided_slice %31 {offsets = [0, 8], sizes = [32, 4], strides = [1, 1]} : vector<32x32xf32> to vector<32x4xf32>
    %75 = vector.shape_cast %74 : vector<32x4xf32> to vector<2x1x16x4xf32>
    %76 = vector.extract_strided_slice %31 {offsets = [0, 12], sizes = [32, 4], strides = [1, 1]} : vector<32x32xf32> to vector<32x4xf32>
    %77 = vector.shape_cast %76 : vector<32x4xf32> to vector<2x1x16x4xf32>
    %78 = vector.extract_strided_slice %31 {offsets = [0, 16], sizes = [32, 4], strides = [1, 1]} : vector<32x32xf32> to vector<32x4xf32>
    %79 = vector.shape_cast %78 : vector<32x4xf32> to vector<2x1x16x4xf32>
    %80 = vector.extract_strided_slice %31 {offsets = [0, 20], sizes = [32, 4], strides = [1, 1]} : vector<32x32xf32> to vector<32x4xf32>
    %81 = vector.shape_cast %80 : vector<32x4xf32> to vector<2x1x16x4xf32>
    %82 = vector.extract_strided_slice %31 {offsets = [0, 24], sizes = [32, 4], strides = [1, 1]} : vector<32x32xf32> to vector<32x4xf32>
    %83 = vector.shape_cast %82 : vector<32x4xf32> to vector<2x1x16x4xf32>
    %84 = vector.extract_strided_slice %31 {offsets = [0, 28], sizes = [32, 4], strides = [1, 1]} : vector<32x32xf32> to vector<32x4xf32>
    %85 = vector.shape_cast %84 : vector<32x4xf32> to vector<2x1x16x4xf32>
    %86 = tpu.concatenate %71, %73, %75, %77, %79, %81, %83, %85 in 1 : vector<2x1x16x4xf32>, vector<2x1x16x4xf32>, vector<2x1x16x4xf32>, vector<2x1x16x4xf32>, vector<2x1x16x4xf32>, vector<2x1x16x4xf32>, vector<2x1x16x4xf32>, vector<2x1x16x4xf32> -> vector<2x8x16x4xf32>
    %87 = vector.shape_cast %86 : vector<2x8x16x4xf32> to vector<16x16x4xf32>
    %88 = arith.truncf %87 : vector<16x16x4xf32> to vector<16x16x4xbf16>
    "tpu.trace_start"() <{level = 10 : i32, message = "gnd,gmd->gnm"}> : () -> ()
    %cst_14 = arith.constant dense<0.000000e+00> : vector<16x16x16xf32>
    %89 = tpu.matmul %50, %69, %cst_14 {dimension_numbers = #tpu.dot_dimension_numbers<[2], [2], [1], [1], [0, 0, 0, 1, 1, 1], [0], [0]>} : vector<16x16x4xbf16>, vector<16x16x4xbf16>, vector<16x16x16xf32> -> vector<16x16x16xf32>
    "tpu.trace_stop"() : () -> ()
    %cst_15 = arith.constant dense<0xFF800000> : vector<16x16xf32>
    %90 = vector.multi_reduction <maximumf>, %89, %cst_15 [2] : vector<16x16x16xf32> to vector<16x16xf32>
    %91 = vector.shape_cast %90 : vector<16x16xf32> to vector<16x16x1xf32>
    %92 = vector.broadcast %91 : vector<16x16x1xf32> to vector<16x16x16xf32>
    %93 = arith.subf %89, %92 : vector<16x16x16xf32>
    %94 = math.exp %93 : vector<16x16x16xf32>
    %cst_16 = arith.constant dense<0.000000e+00> : vector<16x16xf32>
    %95 = vector.multi_reduction <add>, %94, %cst_16 [2] : vector<16x16x16xf32> to vector<16x16xf32>
    %96 = vector.shape_cast %95 : vector<16x16xf32> to vector<16x16x1xf32>
    %97 = arith.truncf %94 : vector<16x16x16xf32> to vector<16x16x16xbf16>
    "tpu.trace_start"() <{level = 10 : i32, message = "gnm,gmd->gnd"}> : () -> ()
    %cst_17 = arith.constant dense<0.000000e+00> : vector<16x16x4xf32>
    %98 = tpu.matmul %97, %88, %cst_17 {dimension_numbers = #tpu.dot_dimension_numbers<[2], [1], [1], [2], [0, 0, 0, 1, 1, 2], [0], [0]>} : vector<16x16x16xbf16>, vector<16x16x4xbf16>, vector<16x16x4xf32> -> vector<16x16x4xf32>
    "tpu.trace_stop"() : () -> ()
    %99 = tpu.reciprocal %96 {approx = true} : vector<16x16x1xf32> -> vector<16x16x1xf32>
    %100 = vector.broadcast %99 : vector<16x16x1xf32> to vector<16x16x4xf32>
    %101 = arith.mulf %98, %100 : vector<16x16x4xf32>
    %102 = vector.shape_cast %101 : vector<16x16x4xf32> to vector<2x8x16x4xf32>
    %103 = vector.extract_strided_slice %102 {offsets = [0, 0, 0, 0], sizes = [2, 1, 16, 4], strides = [1, 1, 1, 1]} : vector<2x8x16x4xf32> to vector<2x1x16x4xf32>
    %104 = vector.shape_cast %103 : vector<2x1x16x4xf32> to vector<2x16x4xf32>
    %105 = vector.shape_cast %104 : vector<2x16x4xf32> to vector<32x4xf32>
    %106 = vector.extract_strided_slice %102 {offsets = [0, 1, 0, 0], sizes = [2, 1, 16, 4], strides = [1, 1, 1, 1]} : vector<2x8x16x4xf32> to vector<2x1x16x4xf32>
    %107 = vector.shape_cast %106 : vector<2x1x16x4xf32> to vector<2x16x4xf32>
    %108 = vector.shape_cast %107 : vector<2x16x4xf32> to vector<32x4xf32>
    %109 = vector.extract_strided_slice %102 {offsets = [0, 2, 0, 0], sizes = [2, 1, 16, 4], strides = [1, 1, 1, 1]} : vector<2x8x16x4xf32> to vector<2x1x16x4xf32>
    %110 = vector.shape_cast %109 : vector<2x1x16x4xf32> to vector<2x16x4xf32>
    %111 = vector.shape_cast %110 : vector<2x16x4xf32> to vector<32x4xf32>
    %112 = vector.extract_strided_slice %102 {offsets = [0, 3, 0, 0], sizes = [2, 1, 16, 4], strides = [1, 1, 1, 1]} : vector<2x8x16x4xf32> to vector<2x1x16x4xf32>
    %113 = vector.shape_cast %112 : vector<2x1x16x4xf32> to vector<2x16x4xf32>
    %114 = vector.shape_cast %113 : vector<2x16x4xf32> to vector<32x4xf32>
    %115 = vector.extract_strided_slice %102 {offsets = [0, 4, 0, 0], sizes = [2, 1, 16, 4], strides = [1, 1, 1, 1]} : vector<2x8x16x4xf32> to vector<2x1x16x4xf32>
    %116 = vector.shape_cast %115 : vector<2x1x16x4xf32> to vector<2x16x4xf32>
    %117 = vector.shape_cast %116 : vector<2x16x4xf32> to vector<32x4xf32>
    %118 = vector.extract_strided_slice %102 {offsets = [0, 5, 0, 0], sizes = [2, 1, 16, 4], strides = [1, 1, 1, 1]} : vector<2x8x16x4xf32> to vector<2x1x16x4xf32>
    %119 = vector.shape_cast %118 : vector<2x1x16x4xf32> to vector<2x16x4xf32>
    %120 = vector.shape_cast %119 : vector<2x16x4xf32> to vector<32x4xf32>
    %121 = vector.extract_strided_slice %102 {offsets = [0, 6, 0, 0], sizes = [2, 1, 16, 4], strides = [1, 1, 1, 1]} : vector<2x8x16x4xf32> to vector<2x1x16x4xf32>
    %122 = vector.shape_cast %121 : vector<2x1x16x4xf32> to vector<2x16x4xf32>
    %123 = vector.shape_cast %122 : vector<2x16x4xf32> to vector<32x4xf32>
    %124 = vector.extract_strided_slice %102 {offsets = [0, 7, 0, 0], sizes = [2, 1, 16, 4], strides = [1, 1, 1, 1]} : vector<2x8x16x4xf32> to vector<2x1x16x4xf32>
    %125 = vector.shape_cast %124 : vector<2x1x16x4xf32> to vector<2x16x4xf32>
    %126 = vector.shape_cast %125 : vector<2x16x4xf32> to vector<32x4xf32>
    %127 = tpu.concatenate %105, %108, %111, %114, %117, %120, %123, %126 in 1 : vector<32x4xf32>, vector<32x4xf32>, vector<32x4xf32>, vector<32x4xf32>, vector<32x4xf32>, vector<32x4xf32>, vector<32x4xf32>, vector<32x4xf32> -> vector<32x32xf32>
    %128 = arith.truncf %127 : vector<32x32xf32> to vector<32x32xbf16>
    %c0_18 = arith.constant 0 : index
    %c0_19 = arith.constant 0 : index
    %129 = vector.load %arg5[%c0_18, %c0_19] : memref<32x32xbf16, #tpu.memory_space<vmem>>, vector<32x32xbf16>
    %cst_20 = arith.constant dense<0.000000e+00> : vector<32x32xf32>
    %130 = tpu.matmul %128, %129, %cst_20 {dimension_numbers = #tpu.dot_dimension_numbers<[1], [0], [0], [1], [0, 0, 1, 1], [], []>} : vector<32x32xbf16>, vector<32x32xbf16>, vector<32x32xf32> -> vector<32x32xf32>
    %c0_21 = arith.constant 0 : index
    %c0_22 = arith.constant 0 : index
    %131 = vector.load %arg6[%c0_21, %c0_22] : memref<1x32xf32, #tpu.memory_space<vmem>>, vector<1x32xf32>
    %132 = vector.broadcast %131 : vector<1x32xf32> to vector<32x32xf32>
    %133 = arith.addf %130, %132 : vector<32x32xf32>
    %134 = arith.addf %0, %133 : vector<32x32xf32>
    %c0_23 = arith.constant 0 : index
    %c0_24 = arith.constant 0 : index
    %135 = vector.load %arg7[%c0_23, %c0_24] : memref<1x32xf32, #tpu.memory_space<vmem>>, vector<1x32xf32>
    %c0_25 = arith.constant 0 : index
    %c0_26 = arith.constant 0 : index
    %136 = vector.load %arg8[%c0_25, %c0_26] : memref<1x32xf32, #tpu.memory_space<vmem>>, vector<1x32xf32>
    %cst_27 = arith.constant dense<0.000000e+00> : vector<32xf32>
    %137 = vector.multi_reduction <add>, %134, %cst_27 [1] : vector<32x32xf32> to vector<32xf32>
    %138 = vector.shape_cast %137 : vector<32xf32> to vector<32x1xf32>
    %cst_28 = arith.constant 3.200000e+01 : f32
    %139 = vector.broadcast %cst_28 : f32 to vector<32x1xf32>
    %140 = arith.divf %138, %139 : vector<32x1xf32>
    %141 = vector.broadcast %140 : vector<32x1xf32> to vector<32x32xf32>
    %142 = arith.subf %134, %141 : vector<32x32xf32>
    %143 = arith.mulf %142, %142 : vector<32x32xf32>
    %cst_29 = arith.constant dense<0.000000e+00> : vector<32xf32>
    %144 = vector.multi_reduction <add>, %143, %cst_29 [1] : vector<32x32xf32> to vector<32xf32>
    %145 = vector.shape_cast %144 : vector<32xf32> to vector<32x1xf32>
    %cst_30 = arith.constant 3.200000e+01 : f32
    %146 = vector.broadcast %cst_30 : f32 to vector<32x1xf32>
    %147 = arith.divf %145, %146 : vector<32x1xf32>
    %cst_31 = arith.constant 9.99999974E-6 : f32
    %148 = vector.broadcast %cst_31 : f32 to vector<32x1xf32>
    %149 = arith.addf %147, %148 : vector<32x1xf32>
    %150 = math.rsqrt %149 : vector<32x1xf32>
    %151 = vector.broadcast %150 : vector<32x1xf32> to vector<32x32xf32>
    %152 = arith.mulf %142, %151 : vector<32x32xf32>
    %153 = vector.broadcast %135 : vector<1x32xf32> to vector<32x32xf32>
    %154 = arith.mulf %152, %153 : vector<32x32xf32>
    %155 = vector.broadcast %136 : vector<1x32xf32> to vector<32x32xf32>
    %156 = arith.addf %154, %155 : vector<32x32xf32>
    %157 = arith.truncf %156 : vector<32x32xf32> to vector<32x32xbf16>
    %c0_32 = arith.constant 0 : index
    %c0_33 = arith.constant 0 : index
    %158 = vector.load %arg9[%c0_32, %c0_33] : memref<32x128xbf16, #tpu.memory_space<vmem>>, vector<32x128xbf16>
    %cst_34 = arith.constant dense<0.000000e+00> : vector<32x128xf32>
    %159 = tpu.matmul %157, %158, %cst_34 {dimension_numbers = #tpu.dot_dimension_numbers<[1], [0], [0], [1], [0, 0, 1, 1], [], []>} : vector<32x32xbf16>, vector<32x128xbf16>, vector<32x128xf32> -> vector<32x128xf32>
    %c0_35 = arith.constant 0 : index
    %c0_36 = arith.constant 0 : index
    %160 = vector.load %arg10[%c0_35, %c0_36] : memref<1x128xf32, #tpu.memory_space<vmem>>, vector<1x128xf32>
    %161 = vector.broadcast %160 : vector<1x128xf32> to vector<32x128xf32>
    %162 = arith.addf %159, %161 : vector<32x128xf32>
    %cst_37 = arith.constant 5.000000e-01 : f32
    %163 = vector.broadcast %cst_37 : f32 to vector<32x128xf32>
    %164 = arith.mulf %163, %162 : vector<32x128xf32>
    %cst_38 = arith.constant 4.471500e-02 : f32
    %165 = vector.broadcast %cst_38 : f32 to vector<32x128xf32>
    %166 = arith.mulf %165, %162 : vector<32x128xf32>
    %167 = arith.mulf %166, %162 : vector<32x128xf32>
    %168 = arith.mulf %167, %162 : vector<32x128xf32>
    %169 = arith.addf %162, %168 : vector<32x128xf32>
    %cst_39 = arith.constant 0.797884583 : f32
    %170 = vector.broadcast %cst_39 : f32 to vector<32x128xf32>
    %171 = arith.mulf %170, %169 : vector<32x128xf32>
    %172 = math.tanh %171 : vector<32x128xf32>
    %cst_40 = arith.constant 1.000000e+00 : f32
    %173 = vector.broadcast %cst_40 : f32 to vector<32x128xf32>
    %174 = arith.addf %173, %172 : vector<32x128xf32>
    %175 = arith.mulf %164, %174 : vector<32x128xf32>
    %176 = arith.truncf %175 : vector<32x128xf32> to vector<32x128xbf16>
    %c0_41 = arith.constant 0 : index
    %c0_42 = arith.constant 0 : index
    %177 = vector.load %arg11[%c0_41, %c0_42] : memref<128x32xbf16, #tpu.memory_space<vmem>>, vector<128x32xbf16>
    %cst_43 = arith.constant dense<0.000000e+00> : vector<32x32xf32>
    %178 = tpu.matmul %176, %177, %cst_43 {dimension_numbers = #tpu.dot_dimension_numbers<[1], [0], [0], [1], [0, 0, 1, 1], [], []>} : vector<32x128xbf16>, vector<128x32xbf16>, vector<32x32xf32> -> vector<32x32xf32>
    %c0_44 = arith.constant 0 : index
    %c0_45 = arith.constant 0 : index
    %179 = vector.load %arg12[%c0_44, %c0_45] : memref<1x32xf32, #tpu.memory_space<vmem>>, vector<1x32xf32>
    %180 = vector.broadcast %179 : vector<1x32xf32> to vector<32x32xf32>
    %181 = arith.addf %178, %180 : vector<32x32xf32>
    %182 = arith.addf %134, %181 : vector<32x32xf32>
    %c0_46 = arith.constant 0 : index
    %c0_47 = arith.constant 0 : index
    %183 = vector.load %arg13[%c0_46, %c0_47] : memref<32x32xf32, #tpu.memory_space<vmem>>, vector<32x32xf32>
    tpu.vector_store %arg13[%c0_46, %c0_47], %182 {strides = array<i32>} : memref<32x32xf32, #tpu.memory_space<vmem>>, vector<32x32xf32>,
    return
  }
}

</mosaic_0001>

<llo_original>
// kernel: tpu_custom_call.1
$region0: #{tpu_custom_call.1}
  #allocation0 [shape = 'u32[]', space=smem, size = 0x4, offset = 0x4, fixed_abs, tag = 'smem constant byte address 0x4 - core index']
  #allocation1 [shape = 'u32[144,128]{1,0:T(1,128)}', space=vmem, size = 0x12000, scoped, tag = 'internal scratch']
  %s0 = inlined_call_operand.vmem [shape: f32[32,32], index: 0, kind: input, shape index: {}]
  %s1 = inlined_call_operand.vmem [shape: f32[1,32], index: 1, kind: input, shape index: {}]
  %s2 = inlined_call_operand.vmem [shape: f32[1,32], index: 2, kind: input, shape index: {}]
  %s3 = inlined_call_operand.vmem [shape: bf16[32,96], index: 3, kind: input, shape index: {}]
  %s4 = inlined_call_operand.vmem [shape: f32[1,96], index: 4, kind: input, shape index: {}]
  %s5 = inlined_call_operand.vmem [shape: bf16[32,32], index: 5, kind: input, shape index: {}]
  %s6 = inlined_call_operand.vmem [shape: f32[1,32], index: 6, kind: input, shape index: {}]
  %s7 = inlined_call_operand.vmem [shape: f32[1,32], index: 7, kind: input, shape index: {}]
  %s8 = inlined_call_operand.vmem [shape: f32[1,32], index: 8, kind: input, shape index: {}]
  %s9 = inlined_call_operand.vmem [shape: bf16[32,128], index: 9, kind: input, shape index: {}]
  %s10 = inlined_call_operand.vmem [shape: f32[1,128], index: 10, kind: input, shape index: {}]
  %s11 = inlined_call_operand.vmem [shape: bf16[128,32], index: 11, kind: input, shape index: {}]
  %s12 = inlined_call_operand.vmem [shape: f32[1,32], index: 12, kind: input, shape index: {}]
  %s13 = inlined_call_operand.hbm [shape: f32[32,32], index: 13, kind: output, shape index: {}]
  %s14 = sld [smem:[#allocation0]]
  $region62: #{tpu_custom_call.1} parent=0
    _
  %s16 = ssub.s32 1, %s14
  %s17 = scalar_select 0, %s16, %s14
  $region1: #{tpu_custom_call.1} parent=0
    #allocation2 [shape = 'u8[16384]{0}', space=vmem, size = 0x4000, scoped, tag = 'output window, operand 0, single buffered']
    #allocation3 [shape = 's32[1]{0}', space=sflag, size = 0x4, scoped, tag = 'scoped memory for tpu_custom_call.1']
    %18 = vsyncpa [#allocation3], 0
    // Predicated region
    $region2: #{tpu_custom_call.1} parent=1 // pred_check
      _
    $region3: #{tpu_custom_call.1} parent=1 // pred_check_branch
      %20 = sbr.rel (0) target = $region5
    $region4: #{tpu_custom_call.1} parent=1 // pred_region
      _
    $region5: #{tpu_custom_call.1} parent=1 // pred_fallthru
      _
    // Predicated region
    $region6: #{tpu_custom_call.1} parent=1 // pred_check
      _
    $region7: #{tpu_custom_call.1} parent=1 // pred_check_branch
      %22 = sbr.rel (0) target = $region9
    $region8: #{tpu_custom_call.1} parent=1 // pred_region
      _
    $region9: #{tpu_custom_call.1} parent=1 // pred_fallthru
      _
    // Predicated region
    $region10: #{tpu_custom_call.1} parent=1 // pred_check
      _
    $region11: #{tpu_custom_call.1} parent=1 // pred_check_branch
      %24 = sbr.rel (0) target = $region13
    $region12: #{tpu_custom_call.1} parent=1 // pred_region
      _
    $region13: #{tpu_custom_call.1} parent=1 // pred_fallthru
      _
    // Predicated region
    $region14: #{tpu_custom_call.1} parent=1 // pred_check
      _
    $region15: #{tpu_custom_call.1} parent=1 // pred_check_branch
      %26 = sbr.rel (0) target = $region17
    $region16: #{tpu_custom_call.1} parent=1 // pred_region
      _
    $region17: #{tpu_custom_call.1} parent=1 // pred_fallthru
      _
    // Predicated region
    $region18: #{tpu_custom_call.1} parent=1 // pred_check
      _
    $region19: #{tpu_custom_call.1} parent=1 // pred_check_branch
      %28 = sbr.rel (0) target = $region21
    $region20: #{tpu_custom_call.1} parent=1 // pred_region
      _
    $region21: #{tpu_custom_call.1} parent=1 // pred_fallthru
      _
    // Predicated region
    $region22: #{tpu_custom_call.1} parent=1 // pred_check
      _
    $region23: #{tpu_custom_call.1} parent=1 // pred_check_branch
      %30 = sbr.rel (0) target = $region25
    $region24: #{tpu_custom_call.1} parent=1 // pred_region
      _
    $region25: #{tpu_custom_call.1} parent=1 // pred_fallthru
      _
    // Predicated region
    $region26: #{tpu_custom_call.1} parent=1 // pred_check
      _
    $region27: #{tpu_custom_call.1} parent=1 // pred_check_branch
      %32 = sbr.rel (0) target = $region29
    $region28: #{tpu_custom_call.1} parent=1 // pred_region
      _
    $region29: #{tpu_custom_call.1} parent=1 // pred_fallthru
      _
    // Predicated region
    $region30: #{tpu_custom_call.1} parent=1 // pred_check
      _
    $region31: #{tpu_custom_call.1} parent=1 // pred_check_branch
      %34 = sbr.rel (0) target = $region33
    $region32: #{tpu_custom_call.1} parent=1 // pred_region
      _
    $region33: #{tpu_custom_call.1} parent=1 // pred_fallthru
      _
    // Predicated region
    $region34: #{tpu_custom_call.1} parent=1 // pred_check
      _
    $region35: #{tpu_custom_call.1} parent=1 // pred_check_branch
      %36 = sbr.rel (0) target = $region37
    $region36: #{tpu_custom_call.1} parent=1 // pred_region
      _
    $region37: #{tpu_custom_call.1} parent=1 // pred_fallthru
      _
    // Predicated region
    $region38: #{tpu_custom_call.1} parent=1 // pred_check
      _
    $region39: #{tpu_custom_call.1} parent=1 // pred_check_branch
      %38 = sbr.rel (0) target = $region41
    $region40: #{tpu_custom_call.1} parent=1 // pred_region
      _
    $region41: #{tpu_custom_call.1} parent=1 // pred_fallthru
      _
    // Predicated region
    $region42: #{tpu_custom_call.1} parent=1 // pred_check
      _
    $region43: #{tpu_custom_call.1} parent=1 // pred_check_branch
      %40 = sbr.rel (0) target = $region45
    $region44: #{tpu_custom_call.1} parent=1 // pred_region
      _
    $region45: #{tpu_custom_call.1} parent=1 // pred_fallthru
      _
    // Predicated region
    $region46: #{tpu_custom_call.1} parent=1 // pred_check
      _
    $region47: #{tpu_custom_call.1} parent=1 // pred_check_branch
      %42 = sbr.rel (0) target = $region49
    $region48: #{tpu_custom_call.1} parent=1 // pred_region
      _
    $region49: #{tpu_custom_call.1} parent=1 // pred_fallthru
      _
    // Predicated region
    $region50: #{tpu_custom_call.1} parent=1 // pred_check
      _
    $region51: #{tpu_custom_call.1} parent=1 // pred_check_branch
      %44 = sbr.rel (0) target = $region53
    $region52: #{tpu_custom_call.1} parent=1 // pred_region
      _
    $region53: #{tpu_custom_call.1} parent=1 // pred_fallthru
      _
    %v46 = vld [vmem:[%s0] sm:$0xff]
    %v47 = vld [vmem:[%s0 + $0x8] sm:$0xff]
    %v48 = vld [vmem:[%s0 + $0x10] sm:$0xff]
    %v49 = vld [vmem:[%s0 + $0x18] sm:$0xff]
    %v50 = vld [vmem:[%s1] sm:$0x1]
    %v51 = vld [vmem:[%s2] sm:$0x1]
    %vm52 = vcmask 261120
    %v53 = vsel %vm52, %v46, 0.0
    %54 = vadd.xlane.f32.xlu0 %v53
    %v55 = vpop.xlane.xlu0 %54
    %v56 = vsel %vm52, %v47, 0.0
    %57 = vadd.xlane.f32.xlu0 %v56
    %v58 = vpop.xlane.xlu0 %57
    %v59 = vsel %vm52, %v48, 0.0
    %60 = vadd.xlane.f32.xlu0 %v59
    %v61 = vpop.xlane.xlu0 %60
    %v62 = vsel %vm52, %v49, 0.0
    %63 = vadd.xlane.f32.xlu0 %v62
    %v64 = vpop.xlane.xlu0 %63
    %v65 = vrcp.pop 32.0
    %v66 = vmul.f32 %v55, %v65
    %v67 = vmul.f32 %v58, %v65
    %v68 = vmul.f32 %v61, %v65
    %v69 = vmul.f32 %v64, %v65
    %v70 = vsub.f32 %v46, %v66
    %v71 = vsub.f32 %v47, %v67
    %v72 = vsub.f32 %v48, %v68
    %v73 = vsub.f32 %v49, %v69
    %v74 = vmul.f32 %v70, %v70
    %v75 = vmul.f32 %v71, %v71
    %v76 = vmul.f32 %v72, %v72
    %v77 = vmul.f32 %v73, %v73
    %v78 = vsel %vm52, %v74, 0.0
    %79 = vadd.xlane.f32.xlu0 %v78
    %v80 = vpop.xlane.xlu0 %79
    %v81 = vsel %vm52, %v75, 0.0
    %82 = vadd.xlane.f32.xlu0 %v81
    %v83 = vpop.xlane.xlu0 %82
    %v84 = vsel %vm52, %v76, 0.0
    %85 = vadd.xlane.f32.xlu0 %v84
    %v86 = vpop.xlane.xlu0 %85
    %v87 = vsel %vm52, %v77, 0.0
    %88 = vadd.xlane.f32.xlu0 %v87
    %v89 = vpop.xlane.xlu0 %88
    %v90 = vmul.f32 %v80, %v65
    %v91 = vmul.f32 %v83, %v65
    %v92 = vmul.f32 %v86, %v65
    %v93 = vmul.f32 %v89, %v65
    %v94 = vadd.f32 %v90, 1e-05
    %v95 = vadd.f32 %v91, 1e-05
    %v96 = vadd.f32 %v92, 1e-05
    %v97 = vadd.f32 %v93, 1e-05
    %v98 = vrsqrt.pop %v94
    %v99 = vrsqrt.pop %v95
    %v100 = vrsqrt.pop %v96
    %v101 = vrsqrt.pop %v97
    %v102 = vmul.f32 %v70, %v98
    %v103 = vmul.f32 %v71, %v99
    %v104 = vmul.f32 %v72, %v100
    %v105 = vmul.f32 %v73, %v101
    %v107 = vlaneseq
    %v108 = vshrl.u32 %v107, 7
    %v109 = vsub.s32 0, %v108
    %v110 = vrot.slane %v50, %v109
    %v112 = vmul.f32 %v102, %v110
    %v113 = vmul.f32 %v103, %v110
    %v114 = vmul.f32 %v104, %v110
    %v115 = vmul.f32 %v105, %v110
    %v117 = vlaneseq
    %v118 = vshrl.u32 %v117, 7
    %v119 = vsub.s32 0, %v118
    %v120 = vrot.slane %v51, %v119
    %v122 = vadd.f32 %v112, %v120
    %v123 = vadd.f32 %v113, %v120
    %v124 = vadd.f32 %v114, %v120
    %v125 = vadd.f32 %v115, %v120
    %v126 = vpack.c.bf16 %v123, %v122
    %v127 = vpack.c.bf16 %v125, %v124
    %v128 = vld [vmem:[%s3] sm:$0xf]
    %v129 = vld [vmem:[%s3 + $0x4] sm:$0xf]
    %v130 = vld [vmem:[%s3 + $0x8] sm:$0xf]
    %v131 = vld [vmem:[%s3 + $0xc] sm:$0xf]
    %v132 = vld [vmem:[%s4] sm:$0x1]
    %v134 = vlaneseq
    %v135 = vshrl.u32 %v134, 7
    %v136 = vsub.s32 0, %v135
    %v137 = vrot.slane %v132, %v136
    %v143 = vunpack.c.l.b16 %v128
    %v144 = vunpack.c.l.b16 %v129
    %v145 = vunpack.c.l.b16 %v130
    %v146 = vunpack.c.l.b16 %v131
    %v147 = vpack.c.b16 %v144, %v143
    %v148 = vpack.c.b16 %v146, %v145
    %v152 = vsel %vm52, %v126, 0
    %v155 = vsel %vm52, %v127, 0
    %157 = vmatprep.subr.bf16.mxu0 0
    %158 = vmatpush1.bf16.msra.mxu0 %v147
    %159 = vmatprep.subr.bf16.mxu0 0
    %160 = vmatpush1.bf16.msra.mxu0 %v148
    %161 = vmatprep.subr.bf16.mxu0 0
    %162 = vmatpush1.bf16.msra.mxu0 0
    %163 = vmatprep.subr.bf16.mxu0 0
    %164 = vmatpush1.bf16.msra.mxu0 0
    %165 = vmatprep.subr.bf16.mxu0 0
    %166 = vmatpush1.bf16.msra.mxu0 0
    %167 = vmatprep.subr.bf16.mxu0 0
    %168 = vmatpush1.bf16.msra.mxu0 0
    %169 = vmatprep.subr.bf16.mxu0 0
    %170 = vmatpush1.bf16.msra.mxu0 0
    %171 = vmatprep.subr.bf16.mxu0 0
    %172 = vmatpush1.bf16.msra.mxu0 0
    %173 = vmatprep.subr.bf16.mxu0 0
    %174 = vmatpush1.bf16.msra.mxu0 0
    %175 = vmatprep.subr.bf16.mxu0 0
    %176 = vmatpush1.bf16.msra.mxu0 0
    %177 = vmatprep.subr.bf16.mxu0 0
    %178 = vmatpush1.bf16.msra.mxu0 0
    %179 = vmatprep.subr.bf16.mxu0 0
    %180 = vmatpush1.bf16.msra.mxu0 0
    %181 = vmatprep.subr.bf16.mxu0 0
    %182 = vmatpush1.bf16.msra.mxu0 0
    %183 = vmatprep.subr.bf16.mxu0 0
    %184 = vmatpush1.bf16.msra.mxu0 0
    %185 = vmatprep.subr.bf16.mxu0 0
    %186 = vmatpush1.bf16.msra.mxu0 0
    %187 = vmatprep.subr.bf16.mxu0 0
    %188 = vmatpush1.bf16.msra.mxu0 0
    %189 = vmatprep.mubr.bf16.mxu0 0
    %190 = vmatmul.mubr.bf16.gmra.mrb[0].mxu0 %v152
    %v191 = vpop.f32.mrb[0].mxu0
    %v192 = vadd.f32 %v137, %v191
    %v193 = vpop.f32.mrb[0].mxu0
    %v194 = vpop.f32.mrb[0].mxu0
    %v195 = vadd.f32 %v137, %v194
    %v196 = vpop.f32.mrb[0].mxu0
    %197 = vmatprep.mubr.bf16.mxu0 0
    %198 = vmatmul.mubr.bf16.gmra.mrb[0].mxu0 %v155
    %v199 = vpop.f32.mrb[0].mxu0
    %v200 = vadd.f32 %v137, %v199
    %v201 = vpop.f32.mrb[0].mxu0
    %v202 = vpop.f32.mrb[0].mxu0
    %v203 = vadd.f32 %v137, %v202
    %v204 = vpop.f32.mrb[0].mxu0
    %205 = vdwg.mxu0
    %210 = vrot.lane.b32.xlu0 %v192, 124
    %v211 = vpop.permute.xlu0 %210
    %212 = vrot.lane.b32.xlu0 %v195, 124
    %v213 = vpop.permute.xlu0 %212
    %214 = vrot.lane.b32.xlu0 %v200, 124
    %v215 = vpop.permute.xlu0 %214
    %216 = vrot.lane.b32.xlu0 %v203, 124
    %v217 = vpop.permute.xlu0 %216
    %222 = vrot.lane.b32.xlu0 %v192, 120
    %v223 = vpop.permute.xlu0 %222
    %224 = vrot.lane.b32.xlu0 %v195, 120
    %v225 = vpop.permute.xlu0 %224
    %226 = vrot.lane.b32.xlu0 %v200, 120
    %v227 = vpop.permute.xlu0 %226
    %228 = vrot.lane.b32.xlu0 %v203, 120
    %v229 = vpop.permute.xlu0 %228
    %234 = vrot.lane.b32.xlu0 %v192, 116
    %v235 = vpop.permute.xlu0 %234
    %236 = vrot.lane.b32.xlu0 %v195, 116
    %v237 = vpop.permute.xlu0 %236
    %238 = vrot.lane.b32.xlu0 %v200, 116
    %v239 = vpop.permute.xlu0 %238
    %240 = vrot.lane.b32.xlu0 %v203, 116
    %v241 = vpop.permute.xlu0 %240
    %246 = vrot.lane.b32.xlu0 %v192, 112
    %v247 = vpop.permute.xlu0 %246
    %248 = vrot.lane.b32.xlu0 %v195, 112
    %v249 = vpop.permute.xlu0 %248
    %250 = vrot.lane.b32.xlu0 %v200, 112
    %v251 = vpop.permute.xlu0 %250
    %252 = vrot.lane.b32.xlu0 %v203, 112
    %v253 = vpop.permute.xlu0 %252
    %258 = vrot.lane.b32.xlu0 %v192, 108
    %v259 = vpop.permute.xlu0 %258
    %260 = vrot.lane.b32.xlu0 %v195, 108
    %v261 = vpop.permute.xlu0 %260
    %262 = vrot.lane.b32.xlu0 %v200, 108
    %v263 = vpop.permute.xlu0 %262
    %264 = vrot.lane.b32.xlu0 %v203, 108
    %v265 = vpop.permute.xlu0 %264
    %270 = vrot.lane.b32.xlu0 %v192, 104
    %v271 = vpop.permute.xlu0 %270
    %272 = vrot.lane.b32.xlu0 %v195, 104
    %v273 = vpop.permute.xlu0 %272
    %274 = vrot.lane.b32.xlu0 %v200, 104
    %v275 = vpop.permute.xlu0 %274
    %276 = vrot.lane.b32.xlu0 %v203, 104
    %v277 = vpop.permute.xlu0 %276
    %282 = vrot.lane.b32.xlu0 %v192, 100
    %v283 = vpop.permute.xlu0 %282
    %284 = vrot.lane.b32.xlu0 %v195, 100
    %v285 = vpop.permute.xlu0 %284
    %286 = vrot.lane.b32.xlu0 %v200, 100
    %v287 = vpop.permute.xlu0 %286
    %288 = vrot.lane.b32.xlu0 %v203, 100
    %v289 = vpop.permute.xlu0 %288
    %v294 = vpack.c.bf16 %v195, %v192
    %v295 = vpack.c.bf16 %v213, %v211
    %v296 = vpack.c.bf16 %v225, %v223
    %v297 = vpack.c.bf16 %v237, %v235
    %v298 = vpack.c.bf16 %v249, %v247
    %v299 = vpack.c.bf16 %v261, %v259
    %v300 = vpack.c.bf16 %v273, %v271
    %v301 = vpack.c.bf16 %v285, %v283
    %v302 = vpack.c.bf16 %v203, %v200
    %v303 = vpack.c.bf16 %v217, %v215
    %v304 = vpack.c.bf16 %v229, %v227
    %v305 = vpack.c.bf16 %v241, %v239
    %v306 = vpack.c.bf16 %v253, %v251
    %v307 = vpack.c.bf16 %v265, %v263
    %v308 = vpack.c.bf16 %v277, %v275
    %v309 = vpack.c.bf16 %v289, %v287
    %311 = vrot.lane.b32.xlu0 %v294, 96
    %v312 = vpop.permute.xlu0 %311
    %vm313 = vcmask 31744
    %v315 = vsel %vm313, %v294, 0
    %v318 = vsel %vm313, %v312, 0
    %320 = vmatprep.subr.bf16.mxu0 0
    %321 = vmatpush1.bf16.xpose.msra.mxu0 %v318
    %322 = vmatprep.subr.bf16.mxu0 0
    %323 = vmatpush1.bf16.xpose.msra.mxu0 0
    %324 = vmatprep.subr.bf16.mxu0 0
    %325 = vmatpush1.bf16.xpose.msra.mxu0 0
    %326 = vmatprep.subr.bf16.mxu0 0
    %327 = vmatpush1.bf16.xpose.msra.mxu0 0
    %328 = vmatprep.subr.bf16.mxu0 0
    %329 = vmatpush1.bf16.xpose.msra.mxu0 0
    %330 = vmatprep.subr.bf16.mxu0 0
    %331 = vmatpush1.bf16.xpose.msra.mxu0 0
    %332 = vmatprep.subr.bf16.mxu0 0
    %333 = vmatpush1.bf16.xpose.msra.mxu0 0
    %334 = vmatprep.subr.bf16.mxu0 0
    %335 = vmatpush1.bf16.xpose.msra.mxu0 0
    %336 = vmatprep.subr.bf16.mxu0 0
    %337 = vmatpush1.bf16.xpose.msra.mxu0 0
    %338 = vmatprep.subr.bf16.mxu0 0
    %339 = vmatpush1.bf16.xpose.msra.mxu0 0
    %340 = vmatprep.subr.bf16.mxu0 0
    %341 = vmatpush1.bf16.xpose.msra.mxu0 0
    %342 = vmatprep.subr.bf16.mxu0 0
    %343 = vmatpush1.bf16.xpose.msra.mxu0 0
    %344 = vmatprep.subr.bf16.mxu0 0
    %345 = vmatpush1.bf16.xpose.msra.mxu0 0
    %346 = vmatprep.subr.bf16.mxu0 0
    %347 = vmatpush1.bf16.xpose.msra.mxu0 0
    %348 = vmatprep.subr.bf16.mxu0 0
    %349 = vmatpush1.bf16.xpose.msra.mxu0 0
    %350 = vmatprep.subr.bf16.mxu0 0
    %351 = vmatpush1.bf16.xpose.msra.mxu0 0
    %352 = vmatprep.mubr.bf16.mxu0 0
    %353 = vmatmul.mubr.bf16.gmra.mrb[0].mxu0 %v315
    %v354 = vpop.f32.mrb[0].mxu0
    %v355 = vadd.f32 0.0, %v354
    %v356 = vpop.f32.mrb[0].mxu0
    %v357 = vpop.f32.mrb[0].mxu0
    %v358 = vadd.f32 0.0, %v357
    %v359 = vpop.f32.mrb[0].mxu0
    %360 = vdwg.mxu0
    %362 = vrot.lane.b32.xlu0 %v295, 96
    %v363 = vpop.permute.xlu0 %362
    %v365 = vsel %vm313, %v295, 0
    %v368 = vsel %vm313, %v363, 0
    %370 = vmatprep.subr.bf16.mxu0 0
    %371 = vmatpush1.bf16.xpose.msra.mxu0 %v368
    %372 = vmatprep.subr.bf16.mxu0 0
    %373 = vmatpush1.bf16.xpose.msra.mxu0 0
    %374 = vmatprep.subr.bf16.mxu0 0
    %375 = vmatpush1.bf16.xpose.msra.mxu0 0
    %376 = vmatprep.subr.bf16.mxu0 0
    %377 = vmatpush1.bf16.xpose.msra.mxu0 0
    %378 = vmatprep.subr.bf16.mxu0 0
    %379 = vmatpush1.bf16.xpose.msra.mxu0 0
    %380 = vmatprep.subr.bf16.mxu0 0
    %381 = vmatpush1.bf16.xpose.msra.mxu0 0
    %382 = vmatprep.subr.bf16.mxu0 0
    %383 = vmatpush1.bf16.xpose.msra.mxu0 0
    %384 = vmatprep.subr.bf16.mxu0 0
    %385 = vmatpush1.bf16.xpose.msra.mxu0 0
    %386 = vmatprep.subr.bf16.mxu0 0
    %387 = vmatpush1.bf16.xpose.msra.mxu0 0
    %388 = vmatprep.subr.bf16.mxu0 0
    %389 = vmatpush1.bf16.xpose.msra.mxu0 0
    %390 = vmatprep.subr.bf16.mxu0 0
    %391 = vmatpush1.bf16.xpose.msra.mxu0 0
    %392 = vmatprep.subr.bf16.mxu0 0
    %393 = vmatpush1.bf16.xpose.msra.mxu0 0
    %394 = vmatprep.subr.bf16.mxu0 0
    %395 = vmatpush1.bf16.xpose.msra.mxu0 0
    %396 = vmatprep.subr.bf16.mxu0 0
    %397 = vmatpush1.bf16.xpose.msra.mxu0 0
    %398 = vmatprep.subr.bf16.mxu0 0
    %399 = vmatpush1.bf16.xpose.msra.mxu0 0
    %400 = vmatprep.subr.bf16.mxu0 0
    %401 = vmatpush1.bf16.xpose.msra.mxu0 0
    %402 = vmatprep.mubr.bf16.mxu0 0
    %403 = vmatmul.mubr.bf16.gmra.mrb[0].mxu0 %v365
    %v404 = vpop.f32.mrb[0].mxu0
    %v405 = vadd.f32 0.0, %v404
    %v406 = vpop.f32.mrb[0].mxu0
    %v407 = vpop.f32.mrb[0].mxu0
    %v408 = vadd.f32 0.0, %v407
    %v409 = vpop.f32.mrb[0].mxu0
    %410 = vdwg.mxu0
    %412 = vrot.lane.b32.xlu0 %v296, 96
    %v413 = vpop.permute.xlu0 %412
    %v415 = vsel %vm313, %v296, 0
    %v418 = vsel %vm313, %v413, 0
    %420 = vmatprep.subr.bf16.mxu0 0
    %421 = vmatpush1.bf16.xpose.msra.mxu0 %v418
    %422 = vmatprep.subr.bf16.mxu0 0
    %423 = vmatpush1.bf16.xpose.msra.mxu0 0
    %424 = vmatprep.subr.bf16.mxu0 0
    %425 = vmatpush1.bf16.xpose.msra.mxu0 0
    %426 = vmatprep.subr.bf16.mxu0 0
    %427 = vmatpush1.bf16.xpose.msra.mxu0 0
    %428 = vmatprep.subr.bf16.mxu0 0
    %429 = vmatpush1.bf16.xpose.msra.mxu0 0
    %430 = vmatprep.subr.bf16.mxu0 0
    %431 = vmatpush1.bf16.xpose.msra.mxu0 0
    %432 = vmatprep.subr.bf16.mxu0 0
    %433 = vmatpush1.bf16.xpose.msra.mxu0 0
    %434 = vmatprep.subr.bf16.mxu0 0
    %435 = vmatpush1.bf16.xpose.msra.mxu0 0
    %436 = vmatprep.subr.bf16.mxu0 0
    %437 = vmatpush1.bf16.xpose.msra.mxu0 0
    %438 = vmatprep.subr.bf16.mxu0 0
    %439 = vmatpush1.bf16.xpose.msra.mxu0 0
    %440 = vmatprep.subr.bf16.mxu0 0
    %441 = vmatpush1.bf16.xpose.msra.mxu0 0
    %442 = vmatprep.subr.bf16.mxu0 0
    %443 = vmatpush1.bf16.xpose.msra.mxu0 0
    %444 = vmatprep.subr.bf16.mxu0 0
    %445 = vmatpush1.bf16.xpose.msra.mxu0 0
    %446 = vmatprep.subr.bf16.mxu0 0
    %447 = vmatpush1.bf16.xpose.msra.mxu0 0
    %448 = vmatprep.subr.bf16.mxu0 0
    %449 = vmatpush1.bf16.xpose.msra.mxu0 0
    %450 = vmatprep.subr.bf16.mxu0 0
    %451 = vmatpush1.bf16.xpose.msra.mxu0 0
    %452 = vmatprep.mubr.bf16.mxu0 0
    %453 = vmatmul.mubr.bf16.gmra.mrb[0].mxu0 %v415
    %v454 = vpop.f32.mrb[0].mxu0
    %v455 = vadd.f32 0.0, %v454
    %v456 = vpop.f32.mrb[0].mxu0
    %v457 = vpop.f32.mrb[0].mxu0
    %v458 = vadd.f32 0.0, %v457
    %v459 = vpop.f32.mrb[0].mxu0
    %460 = vdwg.mxu0
    %462 = vrot.lane.b32.xlu0 %v297, 96
    %v463 = vpop.permute.xlu0 %462
    %v465 = vsel %vm313, %v297, 0
    %v468 = vsel %vm313, %v463, 0
    %470 = vmatprep.subr.bf16.mxu0 0
    %471 = vmatpush1.bf16.xpose.msra.mxu0 %v468
    %472 = vmatprep.subr.bf16.mxu0 0
    %473 = vmatpush1.bf16.xpose.msra.mxu0 0
    %474 = vmatprep.subr.bf16.mxu0 0
    %475 = vmatpush1.bf16.xpose.msra.mxu0 0
    %476 = vmatprep.subr.bf16.mxu0 0
    %477 = vmatpush1.bf16.xpose.msra.mxu0 0
    %478 = vmatprep.subr.bf16.mxu0 0
    %479 = vmatpush1.bf16.xpose.msra.mxu0 0
    %480 = vmatprep.subr.bf16.mxu0 0
    %481 = vmatpush1.bf16.xpose.msra.mxu0 0
    %482 = vmatprep.subr.bf16.mxu0 0
    %483 = vmatpush1.bf16.xpose.msra.mxu0 0
    %484 = vmatprep.subr.bf16.mxu0 0
    %485 = vmatpush1.bf16.xpose.msra.mxu0 0
    %486 = vmatprep.subr.bf16.mxu0 0
    %487 = vmatpush1.bf16.xpose.msra.mxu0 0
    %488 = vmatprep.subr.bf16.mxu0 0
    %489 = vmatpush1.bf16.xpose.msra.mxu0 0
    %490 = vmatprep.subr.bf16.mxu0 0
    %491 = vmatpush1.bf16.xpose.msra.mxu0 0
    %492 = vmatprep.subr.bf16.mxu0 0
    %493 = vmatpush1.bf16.xpose.msra.mxu0 0
    %494 = vmatprep.subr.bf16.mxu0 0
    %495 = vmatpush1.bf16.xpose.msra.mxu0 0
    %496 = vmatprep.subr.bf16.mxu0 0
    %497 = vmatpush1.bf16.xpose.msra.mxu0 0
    %498 = vmatprep.subr.bf16.mxu0 0
    %499 = vmatpush1.bf16.xpose.msra.mxu0 0
    %500 = vmatprep.subr.bf16.mxu0 0
    %501 = vmatpush1.bf16.xpose.msra.mxu0 0
    %502 = vmatprep.mubr.bf16.mxu0 0
    %503 = vmatmul.mubr.bf16.gmra.mrb[0].mxu0 %v465
    %v504 = vpop.f32.mrb[0].mxu0
    %v505 = vadd.f32 0.0, %v504
    %v506 = vpop.f32.mrb[0].mxu0
    %v507 = vpop.f32.mrb[0].mxu0
    %v508 = vadd.f32 0.0, %v507
    %v509 = vpop.f32.mrb[0].mxu0
    %510 = vdwg.mxu0
    %512 = vrot.lane.b32.xlu0 %v298, 96
    %v513 = vpop.permute.xlu0 %512
    %v515 = vsel %vm313, %v298, 0
    %v518 = vsel %vm313, %v513, 0
    %520 = vmatprep.subr.bf16.mxu0 0
    %521 = vmatpush1.bf16.xpose.msra.mxu0 %v518
    %522 = vmatprep.subr.bf16.mxu0 0
    %523 = vmatpush1.bf16.xpose.msra.mxu0 0
    %524 = vmatprep.subr.bf16.mxu0 0
    %525 = vmatpush1.bf16.xpose.msra.mxu0 0
    %526 = vmatprep.subr.bf16.mxu0 0
    %527 = vmatpush1.bf16.xpose.msra.mxu0 0
    %528 = vmatprep.subr.bf16.mxu0 0
    %529 = vmatpush1.bf16.xpose.msra.mxu0 0
    %530 = vmatprep.subr.bf16.mxu0 0
    %531 = vmatpush1.bf16.xpose.msra.mxu0 0
    %532 = vmatprep.subr.bf16.mxu0 0
    %533 = vmatpush1.bf16.xpose.msra.mxu0 0
    %534 = vmatprep.subr.bf16.mxu0 0
    %535 = vmatpush1.bf16.xpose.msra.mxu0 0
    %536 = vmatprep.subr.bf16.mxu0 0
    %537 = vmatpush1.bf16.xpose.msra.mxu0 0
    %538 = vmatprep.subr.bf16.mxu0 0
    %539 = vmatpush1.bf16.xpose.msra.mxu0 0
    %540 = vmatprep.subr.bf16.mxu0 0
    %541 = vmatpush1.bf16.xpose.msra.mxu0 0
    %542 = vmatprep.subr.bf16.mxu0 0
    %543 = vmatpush1.bf16.xpose.msra.mxu0 0
    %544 = vmatprep.subr.bf16.mxu0 0
    %545 = vmatpush1.bf16.xpose.msra.mxu0 0
    %546 = vmatprep.subr.bf16.mxu0 0
    %547 = vmatpush1.bf16.xpose.msra.mxu0 0
    %548 = vmatprep.subr.bf16.mxu0 0
    %549 = vmatpush1.bf16.xpose.msra.mxu0 0
    %550 = vmatprep.subr.bf16.mxu0 0
    %551 = vmatpush1.bf16.xpose.msra.mxu0 0
    %552 = vmatprep.mubr.bf16.mxu0 0
    %553 = vmatmul.mubr.bf16.gmra.mrb[0].mxu0 %v515
    %v554 = vpop.f32.mrb[0].mxu0
    %v555 = vadd.f32 0.0, %v554
    %v556 = vpop.f32.mrb[0].mxu0
    %v557 = vpop.f32.mrb[0].mxu0
    %v558 = vadd.f32 0.0, %v557
    %v559 = vpop.f32.mrb[0].mxu0
    %560 = vdwg.mxu0
    %562 = vrot.lane.b32.xlu0 %v299, 96
    %v563 = vpop.permute.xlu0 %562
    %v565 = vsel %vm313, %v299, 0
    %v568 = vsel %vm313, %v563, 0
    %570 = vmatprep.subr.bf16.mxu0 0
    %571 = vmatpush1.bf16.xpose.msra.mxu0 %v568
    %572 = vmatprep.subr.bf16.mxu0 0
    %573 = vmatpush1.bf16.xpose.msra.mxu0 0
    %574 = vmatprep.subr.bf16.mxu0 0
    %575 = vmatpush1.bf16.xpose.msra.mxu0 0
    %576 = vmatprep.subr.bf16.mxu0 0
    %577 = vmatpush1.bf16.xpose.msra.mxu0 0
    %578 = vmatprep.subr.bf16.mxu0 0
    %579 = vmatpush1.bf16.xpose.msra.mxu0 0
    %580 = vmatprep.subr.bf16.mxu0 0
    %581 = vmatpush1.bf16.xpose.msra.mxu0 0
    %582 = vmatprep.subr.bf16.mxu0 0
    %583 = vmatpush1.bf16.xpose.msra.mxu0 0
    %584 = vmatprep.subr.bf16.mxu0 0
    %585 = vmatpush1.bf16.xpose.msra.mxu0 0
    %586 = vmatprep.subr.bf16.mxu0 0
    %587 = vmatpush1.bf16.xpose.msra.mxu0 0
    %588 = vmatprep.subr.bf16.mxu0 0
    %589 = vmatpush1.bf16.xpose.msra.mxu0 0
    %590 = vmatprep.subr.bf16.mxu0 0
    %591 = vmatpush1.bf16.xpose.msra.mxu0 0
    %592 = vmatprep.subr.bf16.mxu0 0
    %593 = vmatpush1.bf16.xpose.msra.mxu0 0
    %594 = vmatprep.subr.bf16.mxu0 0
    %595 = vmatpush1.bf16.xpose.msra.mxu0 0
    %596 = vmatprep.subr.bf16.mxu0 0
    %597 = vmatpush1.bf16.xpose.msra.mxu0 0
    %598 = vmatprep.subr.bf16.mxu0 0
    %599 = vmatpush1.bf16.xpose.msra.mxu0 0
    %600 = vmatprep.subr.bf16.mxu0 0
    %601 = vmatpush1.bf16.xpose.msra.mxu0 0
    %602 = vmatprep.mubr.bf16.mxu0 0
    %603 = vmatmul.mubr.bf16.gmra.mrb[0].mxu0 %v565
    %v604 = vpop.f32.mrb[0].mxu0
    %v605 = vadd.f32 0.0, %v604
    %v606 = vpop.f32.mrb[0].mxu0
    %v607 = vpop.f32.mrb[0].mxu0
    %v608 = vadd.f32 0.0, %v607
    %v609 = vpop.f32.mrb[0].mxu0
    %610 = vdwg.mxu0
    %612 = vrot.lane.b32.xlu0 %v300, 96
    %v613 = vpop.permute.xlu0 %612
    %v615 = vsel %vm313, %v300, 0
    %v618 = vsel %vm313, %v613, 0
    %620 = vmatprep.subr.bf16.mxu0 0
    %621 = vmatpush1.bf16.xpose.msra.mxu0 %v618
    %622 = vmatprep.subr.bf16.mxu0 0
    %623 = vmatpush1.bf16.xpose.msra.mxu0 0
    %624 = vmatprep.subr.bf16.mxu0 0
    %625 = vmatpush1.bf16.xpose.msra.mxu0 0
    %626 = vmatprep.subr.bf16.mxu0 0
    %627 = vmatpush1.bf16.xpose.msra.mxu0 0
    %628 = vmatprep.subr.bf16.mxu0 0
    %629 = vmatpush1.bf16.xpose.msra.mxu0 0
    %630 = vmatprep.subr.bf16.mxu0 0
    %631 = vmatpush1.bf16.xpose.msra.mxu0 0
    %632 = vmatprep.subr.bf16.mxu0 0
    %633 = vmatpush1.bf16.xpose.msra.mxu0 0
    %634 = vmatprep.subr.bf16.mxu0 0
    %635 = vmatpush1.bf16.xpose.msra.mxu0 0
    %636 = vmatprep.subr.bf16.mxu0 0
    %637 = vmatpush1.bf16.xpose.msra.mxu0 0
    %638 = vmatprep.subr.bf16.mxu0 0
    %639 = vmatpush1.bf16.xpose.msra.mxu0 0
    %640 = vmatprep.subr.bf16.mxu0 0
    %641 = vmatpush1.bf16.xpose.msra.mxu0 0
    %642 = vmatprep.subr.bf16.mxu0 0
    %643 = vmatpush1.bf16.xpose.msra.mxu0 0
    %644 = vmatprep.subr.bf16.mxu0 0
    %645 = vmatpush1.bf16.xpose.msra.mxu0 0
    %646 = vmatprep.subr.bf16.mxu0 0
    %647 = vmatpush1.bf16.xpose.msra.mxu0 0
    %648 = vmatprep.subr.bf16.mxu0 0
    %649 = vmatpush1.bf16.xpose.msra.mxu0 0
    %650 = vmatprep.subr.bf16.mxu0 0
    %651 = vmatpush1.bf16.xpose.msra.mxu0 0
    %652 = vmatprep.mubr.bf16.mxu0 0
    %653 = vmatmul.mubr.bf16.gmra.mrb[0].mxu0 %v615
    %v654 = vpop.f32.mrb[0].mxu0
    %v655 = vadd.f32 0.0, %v654
    %v656 = vpop.f32.mrb[0].mxu0
    %v657 = vpop.f32.mrb[0].mxu0
    %v658 = vadd.f32 0.0, %v657
    %v659 = vpop.f32.mrb[0].mxu0
    %660 = vdwg.mxu0
    %662 = vrot.lane.b32.xlu0 %v301, 96
    %v663 = vpop.permute.xlu0 %662
    %v665 = vsel %vm313, %v301, 0
    %v668 = vsel %vm313, %v663, 0
    %670 = vmatprep.subr.bf16.mxu0 0
    %671 = vmatpush1.bf16.xpose.msra.mxu0 %v668
    %672 = vmatprep.subr.bf16.mxu0 0
    %673 = vmatpush1.bf16.xpose.msra.mxu0 0
    %674 = vmatprep.subr.bf16.mxu0 0
    %675 = vmatpush1.bf16.xpose.msra.mxu0 0
    %676 = vmatprep.subr.bf16.mxu0 0
    %677 = vmatpush1.bf16.xpose.msra.mxu0 0
    %678 = vmatprep.subr.bf16.mxu0 0
    %679 = vmatpush1.bf16.xpose.msra.mxu0 0
    %680 = vmatprep.subr.bf16.mxu0 0
    %681 = vmatpush1.bf16.xpose.msra.mxu0 0
    %682 = vmatprep.subr.bf16.mxu0 0
    %683 = vmatpush1.bf16.xpose.msra.mxu0 0
    %684 = vmatprep.subr.bf16.mxu0 0
    %685 = vmatpush1.bf16.xpose.msra.mxu0 0
    %686 = vmatprep.subr.bf16.mxu0 0
    %687 = vmatpush1.bf16.xpose.msra.mxu0 0
    %688 = vmatprep.subr.bf16.mxu0 0
    %689 = vmatpush1.bf16.xpose.msra.mxu0 0
    %690 = vmatprep.subr.bf16.mxu0 0
    %691 = vmatpush1.bf16.xpose.msra.mxu0 0
    %692 = vmatprep.subr.bf16.mxu0 0
    %693 = vmatpush1.bf16.xpose.msra.mxu0 0
    %694 = vmatprep.subr.bf16.mxu0 0
    %695 = vmatpush1.bf16.xpose.msra.mxu0 0
    %696 = vmatprep.subr.bf16.mxu0 0
    %697 = vmatpush1.bf16.xpose.msra.mxu0 0
    %698 = vmatprep.subr.bf16.mxu0 0
    %699 = vmatpush1.bf16.xpose.msra.mxu0 0
    %700 = vmatprep.subr.bf16.mxu0 0
    %701 = vmatpush1.bf16.xpose.msra.mxu0 0
    %702 = vmatprep.mubr.bf16.mxu0 0
    %703 = vmatmul.mubr.bf16.gmra.mrb[0].mxu0 %v665
    %v704 = vpop.f32.mrb[0].mxu0
    %v705 = vadd.f32 0.0, %v704
    %v706 = vpop.f32.mrb[0].mxu0
    %v707 = vpop.f32.mrb[0].mxu0
    %v708 = vadd.f32 0.0, %v707
    %v709 = vpop.f32.mrb[0].mxu0
    %710 = vdwg.mxu0
    %712 = vrot.lane.b32.xlu0 %v302, 96
    %v713 = vpop.permute.xlu0 %712
    %v715 = vsel %vm313, %v302, 0
    %v718 = vsel %vm313, %v713, 0
    %720 = vmatprep.subr.bf16.mxu0 0
    %721 = vmatpush1.bf16.xpose.msra.mxu0 %v718
    %722 = vmatprep.subr.bf16.mxu0 0
    %723 = vmatpush1.bf16.xpose.msra.mxu0 0
    %724 = vmatprep.subr.bf16.mxu0 0
    %725 = vmatpush1.bf16.xpose.msra.mxu0 0
    %726 = vmatprep.subr.bf16.mxu0 0
    %727 = vmatpush1.bf16.xpose.msra.mxu0 0
    %728 = vmatprep.subr.bf16.mxu0 0
    %729 = vmatpush1.bf16.xpose.msra.mxu0 0
    %730 = vmatprep.subr.bf16.mxu0 0
    %731 = vmatpush1.bf16.xpose.msra.mxu0 0
    %732 = vmatprep.subr.bf16.mxu0 0
    %733 = vmatpush1.bf16.xpose.msra.mxu0 0
    %734 = vmatprep.subr.bf16.mxu0 0
    %735 = vmatpush1.bf16.xpose.msra.mxu0 0
    %736 = vmatprep.subr.bf16.mxu0 0
    %737 = vmatpush1.bf16.xpose.msra.mxu0 0
    %738 = vmatprep.subr.bf16.mxu0 0
    %739 = vmatpush1.bf16.xpose.msra.mxu0 0
    %740 = vmatprep.subr.bf16.mxu0 0
    %741 = vmatpush1.bf16.xpose.msra.mxu0 0
    %742 = vmatprep.subr.bf16.mxu0 0
    %743 = vmatpush1.bf16.xpose.msra.mxu0 0
    %744 = vmatprep.subr.bf16.mxu0 0
    %745 = vmatpush1.bf16.xpose.msra.mxu0 0
    %746 = vmatprep.subr.bf16.mxu0 0
    %747 = vmatpush1.bf16.xpose.msra.mxu0 0
    %748 = vmatprep.subr.bf16.mxu0 0
    %749 = vmatpush1.bf16.xpose.msra.mxu0 0
    %750 = vmatprep.subr.bf16.mxu0 0
    %751 = vmatpush1.bf16.xpose.msra.mxu0 0
    %752 = vmatprep.mubr.bf16.mxu0 0
    %753 = vmatmul.mubr.bf16.gmra.mrb[0].mxu0 %v715
    %v754 = vpop.f32.mrb[0].mxu0
    %v755 = vadd.f32 0.0, %v754
    %v756 = vpop.f32.mrb[0].mxu0
    %v757 = vpop.f32.mrb[0].mxu0
    %v758 = vadd.f32 0.0, %v757
    %v759 = vpop.f32.mrb[0].mxu0
    %760 = vdwg.mxu0
    %762 = vrot.lane.b32.xlu0 %v303, 96
    %v763 = vpop.permute.xlu0 %762
    %v765 = vsel %vm313, %v303, 0
    %v768 = vsel %vm313, %v763, 0
    %770 = vmatprep.subr.bf16.mxu0 0
    %771 = vmatpush1.bf16.xpose.msra.mxu0 %v768
    %772 = vmatprep.subr.bf16.mxu0 0
    %773 = vmatpush1.bf16.xpose.msra.mxu0 0
    %774 = vmatprep.subr.bf16.mxu0 0
    %775 = vmatpush1.bf16.xpose.msra.mxu0 0
    %776 = vmatprep.subr.bf16.mxu0 0
    %777 = vmatpush1.bf16.xpose.msra.mxu0 0
    %778 = vmatprep.subr.bf16.mxu0 0
    %779 = vmatpush1.bf16.xpose.msra.mxu0 0
    %780 = vmatprep.subr.bf16.mxu0 0
    %781 = vmatpush1.bf16.xpose.msra.mxu0 0
    %782 = vmatprep.subr.bf16.mxu0 0
    %783 = vmatpush1.bf16.xpose.msra.mxu0 0
    %784 = vmatprep.subr.bf16.mxu0 0
    %785 = vmatpush1.bf16.xpose.msra.mxu0 0
    %786 = vmatprep.subr.bf16.mxu0 0
    %787 = vmatpush1.bf16.xpose.msra.mxu0 0
    %788 = vmatprep.subr.bf16.mxu0 0
    %789 = vmatpush1.bf16.xpose.msra.mxu0 0
    %790 = vmatprep.subr.bf16.mxu0 0
    %791 = vmatpush1.bf16.xpose.msra.mxu0 0
    %792 = vmatprep.subr.bf16.mxu0 0
    %793 = vmatpush1.bf16.xpose.msra.mxu0 0
    %794 = vmatprep.subr.bf16.mxu0 0
    %795 = vmatpush1.bf16.xpose.msra.mxu0 0
    %796 = vmatprep.subr.bf16.mxu0 0
    %797 = vmatpush1.bf16.xpose.msra.mxu0 0
    %798 = vmatprep.subr.bf16.mxu0 0
    %799 = vmatpush1.bf16.xpose.msra.mxu0 0
    %800 = vmatprep.subr.bf16.mxu0 0
    %801 = vmatpush1.bf16.xpose.msra.mxu0 0
    %802 = vmatprep.mubr.bf16.mxu0 0
    %803 = vmatmul.mubr.bf16.gmra.mrb[0].mxu0 %v765
    %v804 = vpop.f32.mrb[0].mxu0
    %v805 = vadd.f32 0.0, %v804
    %v806 = vpop.f32.mrb[0].mxu0
    %v807 = vpop.f32.mrb[0].mxu0
    %v808 = vadd.f32 0.0, %v807
    %v809 = vpop.f32.mrb[0].mxu0
    %810 = vdwg.mxu0
    %812 = vrot.lane.b32.xlu0 %v304, 96
    %v813 = vpop.permute.xlu0 %812
    %v815 = vsel %vm313, %v304, 0
    %v818 = vsel %vm313, %v813, 0
    %820 = vmatprep.subr.bf16.mxu0 0
    %821 = vmatpush1.bf16.xpose.msra.mxu0 %v818
    %822 = vmatprep.subr.bf16.mxu0 0
    %823 = vmatpush1.bf16.xpose.msra.mxu0 0
    %824 = vmatprep.subr.bf16.mxu0 0
    %825 = vmatpush1.bf16.xpose.msra.mxu0 0
    %826 = vmatprep.subr.bf16.mxu0 0
    %827 = vmatpush1.bf16.xpose.msra.mxu0 0
    %828 = vmatprep.subr.bf16.mxu0 0
    %829 = vmatpush1.bf16.xpose.msra.mxu0 0
    %830 = vmatprep.subr.bf16.mxu0 0
    %831 = vmatpush1.bf16.xpose.msra.mxu0 0
    %832 = vmatprep.subr.bf16.mxu0 0
    %833 = vmatpush1.bf16.xpose.msra.mxu0 0
    %834 = vmatprep.subr.bf16.mxu0 0
    %835 = vmatpush1.bf16.xpose.msra.mxu0 0
    %836 = vmatprep.subr.bf16.mxu0 0
    %837 = vmatpush1.bf16.xpose.msra.mxu0 0
    %838 = vmatprep.subr.bf16.mxu0 0
    %839 = vmatpush1.bf16.xpose.msra.mxu0 0
    %840 = vmatprep.subr.bf16.mxu0 0
    %841 = vmatpush1.bf16.xpose.msra.mxu0 0
    %842 = vmatprep.subr.bf16.mxu0 0
    %843 = vmatpush1.bf16.xpose.msra.mxu0 0
    %844 = vmatprep.subr.bf16.mxu0 0
    %845 = vmatpush1.bf16.xpose.msra.mxu0 0
    %846 = vmatprep.subr.bf16.mxu0 0
    %847 = vmatpush1.bf16.xpose.msra.mxu0 0
    %848 = vmatprep.subr.bf16.mxu0 0
    %849 = vmatpush1.bf16.xpose.msra.mxu0 0
    %850 = vmatprep.subr.bf16.mxu0 0
    %851 = vmatpush1.bf16.xpose.msra.mxu0 0
    %852 = vmatprep.mubr.bf16.mxu0 0
    %853 = vmatmul.mubr.bf16.gmra.mrb[0].mxu0 %v815
    %v854 = vpop.f32.mrb[0].mxu0
    %v855 = vadd.f32 0.0, %v854
    %v856 = vpop.f32.mrb[0].mxu0
    %v857 = vpop.f32.mrb[0].mxu0
    %v858 = vadd.f32 0.0, %v857
    %v859 = vpop.f32.mrb[0].mxu0
    %860 = vdwg.mxu0
    %862 = vrot.lane.b32.xlu0 %v305, 96
    %v863 = vpop.permute.xlu0 %862
    %v865 = vsel %vm313, %v305, 0
    %v868 = vsel %vm313, %v863, 0
    %870 = vmatprep.subr.bf16.mxu0 0
    %871 = vmatpush1.bf16.xpose.msra.mxu0 %v868
    %872 = vmatprep.subr.bf16.mxu0 0
    %873 = vmatpush1.bf16.xpose.msra.mxu0 0
    %874 = vmatprep.subr.bf16.mxu0 0
    %875 = vmatpush1.bf16.xpose.msra.mxu0 0
    %876 = vmatprep.subr.bf16.mxu0 0
    %877 = vmatpush1.bf16.xpose.msra.mxu0 0
    %878 = vmatprep.subr.bf16.mxu0 0
    %879 = vmatpush1.bf16.xpose.msra.mxu0 0
    %880 = vmatprep.subr.bf16.mxu0 0
    %881 = vmatpush1.bf16.xpose.msra.mxu0 0
    %882 = vmatprep.subr.bf16.mxu0 0
    %883 = vmatpush1.bf16.xpose.msra.mxu0 0
    %884 = vmatprep.subr.bf16.mxu0 0
    %885 = vmatpush1.bf16.xpose.msra.mxu0 0
    %886 = vmatprep.subr.bf16.mxu0 0
    %887 = vmatpush1.bf16.xpose.msra.mxu0 0
    %888 = vmatprep.subr.bf16.mxu0 0
    %889 = vmatpush1.bf16.xpose.msra.mxu0 0
    %890 = vmatprep.subr.bf16.mxu0 0
    %891 = vmatpush1.bf16.xpose.msra.mxu0 0
    %892 = vmatprep.subr.bf16.mxu0 0
    %893 = vmatpush1.bf16.xpose.msra.mxu0 0
    %894 = vmatprep.subr.bf16.mxu0 0
    %895 = vmatpush1.bf16.xpose.msra.mxu0 0
    %896 = vmatprep.subr.bf16.mxu0 0
    %897 = vmatpush1.bf16.xpose.msra.mxu0 0
    %898 = vmatprep.subr.bf16.mxu0 0
    %899 = vmatpush1.bf16.xpose.msra.mxu0 0
    %900 = vmatprep.subr.bf16.mxu0 0
    %901 = vmatpush1.bf16.xpose.msra.mxu0 0
    %902 = vmatprep.mubr.bf16.mxu0 0
    %903 = vmatmul.mubr.bf16.gmra.mrb[0].mxu0 %v865
    %v904 = vpop.f32.mrb[0].mxu0
    %v905 = vadd.f32 0.0, %v904
    %v906 = vpop.f32.mrb[0].mxu0
    %v907 = vpop.f32.mrb[0].mxu0
    %v908 = vadd.f32 0.0, %v907
    %v909 = vpop.f32.mrb[0].mxu0
    %910 = vdwg.mxu0
    %912 = vrot.lane.b32.xlu0 %v306, 96
    %v913 = vpop.permute.xlu0 %912
    %v915 = vsel %vm313, %v306, 0
    %v918 = vsel %vm313, %v913, 0
    %920 = vmatprep.subr.bf16.mxu0 0
    %921 = vmatpush1.bf16.xpose.msra.mxu0 %v918
    %922 = vmatprep.subr.bf16.mxu0 0
    %923 = vmatpush1.bf16.xpose.msra.mxu0 0
    %924 = vmatprep.subr.bf16.mxu0 0
    %925 = vmatpush1.bf16.xpose.msra.mxu0 0
    %926 = vmatprep.subr.bf16.mxu0 0
    %927 = vmatpush1.bf16.xpose.msra.mxu0 0
    %928 = vmatprep.subr.bf16.mxu0 0
    %929 = vmatpush1.bf16.xpose.msra.mxu0 0
    %930 = vmatprep.subr.bf16.mxu0 0
    %931 = vmatpush1.bf16.xpose.msra.mxu0 0
    %932 = vmatprep.subr.bf16.mxu0 0
    %933 = vmatpush1.bf16.xpose.msra.mxu0 0
    %934 = vmatprep.subr.bf16.mxu0 0
    %935 = vmatpush1.bf16.xpose.msra.mxu0 0
    %936 = vmatprep.subr.bf16.mxu0 0
    %937 = vmatpush1.bf16.xpose.msra.mxu0 0
    %938 = vmatprep.subr.bf16.mxu0 0
    %939 = vmatpush1.bf16.xpose.msra.mxu0 0
    %940 = vmatprep.subr.bf16.mxu0 0
    %941 = vmatpush1.bf16.xpose.msra.mxu0 0
    %942 = vmatprep.subr.bf16.mxu0 0
    %943 = vmatpush1.bf16.xpose.msra.mxu0 0
    %944 = vmatprep.subr.bf16.mxu0 0
    %945 = vmatpush1.bf16.xpose.msra.mxu0 0
    %946 = vmatprep.subr.bf16.mxu0 0
    %947 = vmatpush1.bf16.xpose.msra.mxu0 0
    %948 = vmatprep.subr.bf16.mxu0 0
    %949 = vmatpush1.bf16.xpose.msra.mxu0 0
    %950 = vmatprep.subr.bf16.mxu0 0
    %951 = vmatpush1.bf16.xpose.msra.mxu0 0
    %952 = vmatprep.mubr.bf16.mxu0 0
    %953 = vmatmul.mubr.bf16.gmra.mrb[0].mxu0 %v915
    %v954 = vpop.f32.mrb[0].mxu0
    %v955 = vadd.f32 0.0, %v954
    %v956 = vpop.f32.mrb[0].mxu0
    %v957 = vpop.f32.mrb[0].mxu0
    %v958 = vadd.f32 0.0, %v957
    %v959 = vpop.f32.mrb[0].mxu0
    %960 = vdwg.mxu0
    %962 = vrot.lane.b32.xlu0 %v307, 96
    %v963 = vpop.permute.xlu0 %962
    %v965 = vsel %vm313, %v307, 0
    %v968 = vsel %vm313, %v963, 0
    %970 = vmatprep.subr.bf16.mxu0 0
    %971 = vmatpush1.bf16.xpose.msra.mxu0 %v968
    %972 = vmatprep.subr.bf16.mxu0 0
    %973 = vmatpush1.bf16.xpose.msra.mxu0 0
    %974 = vmatprep.subr.bf16.mxu0 0
    %975 = vmatpush1.bf16.xpose.msra.mxu0 0
    %976 = vmatprep.subr.bf16.mxu0 0
    %977 = vmatpush1.bf16.xpose.msra.mxu0 0
    %978 = vmatprep.subr.bf16.mxu0 0
    %979 = vmatpush1.bf16.xpose.msra.mxu0 0
    %980 = vmatprep.subr.bf16.mxu0 0
    %981 = vmatpush1.bf16.xpose.msra.mxu0 0
    %982 = vmatprep.subr.bf16.mxu0 0
    %983 = vmatpush1.bf16.xpose.msra.mxu0 0
    %984 = vmatprep.subr.bf16.mxu0 0
    %985 = vmatpush1.bf16.xpose.msra.mxu0 0
    %986 = vmatprep.subr.bf16.mxu0 0
    %987 = vmatpush1.bf16.xpose.msra.mxu0 0
    %988 = vmatprep.subr.bf16.mxu0 0
    %989 = vmatpush1.bf16.xpose.msra.mxu0 0
    %990 = vmatprep.subr.bf16.mxu0 0
    %991 = vmatpush1.bf16.xpose.msra.mxu0 0
    %992 = vmatprep.subr.bf16.mxu0 0
    %993 = vmatpush1.bf16.xpose.msra.mxu0 0
    %994 = vmatprep.subr.bf16.mxu0 0
    %995 = vmatpush1.bf16.xpose.msra.mxu0 0
    %996 = vmatprep.subr.bf16.mxu0 0
    %997 = vmatpush1.bf16.xpose.msra.mxu0 0
    %998 = vmatprep.subr.bf16.mxu0 0
    %999 = vmatpush1.bf16.xpose.msra.mxu0 0
    %1000 = vmatprep.subr.bf16.mxu0 0
    %1001 = vmatpush1.bf16.xpose.msra.mxu0 0
    %1002 = vmatprep.mubr.bf16.mxu0 0
    %1003 = vmatmul.mubr.bf16.gmra.mrb[0].mxu0 %v965
    %v1004 = vpop.f32.mrb[0].mxu0
    %v1005 = vadd.f32 0.0, %v1004
    %v1006 = vpop.f32.mrb[0].mxu0
    %v1007 = vpop.f32.mrb[0].mxu0
    %v1008 = vadd.f32 0.0, %v1007
    %v1009 = vpop.f32.mrb[0].mxu0
    %1010 = vdwg.mxu0
    %1012 = vrot.lane.b32.xlu0 %v308, 96
    %v1013 = vpop.permute.xlu0 %1012
    %v1015 = vsel %vm313, %v308, 0
    %v1018 = vsel %vm313, %v1013, 0
    %1020 = vmatprep.subr.bf16.mxu0 0
    %1021 = vmatpush1.bf16.xpose.msra.mxu0 %v1018
    %1022 = vmatprep.subr.bf16.mxu0 0
    %1023 = vmatpush1.bf16.xpose.msra.mxu0 0
    %1024 = vmatprep.subr.bf16.mxu0 0
    %1025 = vmatpush1.bf16.xpose.msra.mxu0 0
    %1026 = vmatprep.subr.bf16.mxu0 0
    %1027 = vmatpush1.bf16.xpose.msra.mxu0 0
    %1028 = vmatprep.subr.bf16.mxu0 0
    %1029 = vmatpush1.bf16.xpose.msra.mxu0 0
    %1030 = vmatprep.subr.bf16.mxu0 0
    %1031 = vmatpush1.bf16.xpose.msra.mxu0 0
    %1032 = vmatprep.subr.bf16.mxu0 0
    %1033 = vmatpush1.bf16.xpose.msra.mxu0 0
    %1034 = vmatprep.subr.bf16.mxu0 0
    %1035 = vmatpush1.bf16.xpose.msra.mxu0 0
    %1036 = vmatprep.subr.bf16.mxu0 0
    %1037 = vmatpush1.bf16.xpose.msra.mxu0 0
    %1038 = vmatprep.subr.bf16.mxu0 0
    %1039 = vmatpush1.bf16.xpose.msra.mxu0 0
    %1040 = vmatprep.subr.bf16.mxu0 0
    %1041 = vmatpush1.bf16.xpose.msra.mxu0 0
    %1042 = vmatprep.subr.bf16.mxu0 0
    %1043 = vmatpush1.bf16.xpose.msra.mxu0 0
    %1044 = vmatprep.subr.bf16.mxu0 0
    %1045 = vmatpush1.bf16.xpose.msra.mxu0 0
    %1046 = vmatprep.subr.bf16.mxu0 0
    %1047 = vmatpush1.bf16.xpose.msra.mxu0 0
    %1048 = vmatprep.subr.bf16.mxu0 0
    %1049 = vmatpush1.bf16.xpose.msra.mxu0 0
    %1050 = vmatprep.subr.bf16.mxu0 0
    %1051 = vmatpush1.bf16.xpose.msra.mxu0 0
    %1052 = vmatprep.mubr.bf16.mxu0 0
    %1053 = vmatmul.mubr.bf16.gmra.mrb[0].mxu0 %v1015
    %v1054 = vpop.f32.mrb[0].mxu0
    %v1055 = vadd.f32 0.0, %v1054
    %v1056 = vpop.f32.mrb[0].mxu0
    %v1057 = vpop.f32.mrb[0].mxu0
    %v1058 = vadd.f32 0.0, %v1057
    %v1059 = vpop.f32.mrb[0].mxu0
    %1060 = vdwg.mxu0
    %1062 = vrot.lane.b32.xlu0 %v309, 96
    %v1063 = vpop.permute.xlu0 %1062
    %v1065 = vsel %vm313, %v309, 0
    %v1068 = vsel %vm313, %v1063, 0
    %1070 = vmatprep.subr.bf16.mxu0 0
    %1071 = vmatpush1.bf16.xpose.msra.mxu0 %v1068
    %1072 = vmatprep.subr.bf16.mxu0 0
    %1073 = vmatpush1.bf16.xpose.msra.mxu0 0
    %1074 = vmatprep.subr.bf16.mxu0 0
    %1075 = vmatpush1.bf16.xpose.msra.mxu0 0
    %1076 = vmatprep.subr.bf16.mxu0 0
    %1077 = vmatpush1.bf16.xpose.msra.mxu0 0
    %1078 = vmatprep.subr.bf16.mxu0 0
    %1079 = vmatpush1.bf16.xpose.msra.mxu0 0
    %1080 = vmatprep.subr.bf16.mxu0 0
    %1081 = vmatpush1.bf16.xpose.msra.mxu0 0
    %1082 = vmatprep.subr.bf16.mxu0 0
    %1083 = vmatpush1.bf16.xpose.msra.mxu0 0
    %1084 = vmatprep.subr.bf16.mxu0 0
    %1085 = vmatpush1.bf16.xpose.msra.mxu0 0
    %1086 = vmatprep.subr.bf16.mxu0 0
    %1087 = vmatpush1.bf16.xpose.msra.mxu0 0
    %1088 = vmatprep.subr.bf16.mxu0 0
    %1089 = vmatpush1.bf16.xpose.msra.mxu0 0
    %1090 = vmatprep.subr.bf16.mxu0 0
    %1091 = vmatpush1.bf16.xpose.msra.mxu0 0
    %1092 = vmatprep.subr.bf16.mxu0 0
    %1093 = vmatpush1.bf16.xpose.msra.mxu0 0
    %1094 = vmatprep.subr.bf16.mxu0 0
    %1095 = vmatpush1.bf16.xpose.msra.mxu0 0
    %1096 = vmatprep.subr.bf16.mxu0 0
    %1097 = vmatpush1.bf16.xpose.msra.mxu0 0
    %1098 = vmatprep.subr.bf16.mxu0 0
    %1099 = vmatpush1.bf16.xpose.msra.mxu0 0
    %1100 = vmatprep.subr.bf16.mxu0 0
    %1101 = vmatpush1.bf16.xpose.msra.mxu0 0
    %1102 = vmatprep.mubr.bf16.mxu0 0
    %1103 = vmatmul.mubr.bf16.gmra.mrb[0].mxu0 %v1065
    %v1104 = vpop.f32.mrb[0].mxu0
    %v1105 = vadd.f32 0.0, %v1104
    %v1106 = vpop.f32.mrb[0].mxu0
    %v1107 = vpop.f32.mrb[0].mxu0
    %v1108 = vadd.f32 0.0, %v1107
    %v1109 = vpop.f32.mrb[0].mxu0
    %1110 = vdwg.mxu0
    %vm1111 = vcmask 130048
    %v1112 = vsel %vm1111, %v355, -inf
    %1113 = vmax.xlane.f32.xlu0 %v1112
    %v1114 = vpop.xlane.xlu0 %1113
    %v1115 = vsel %vm1111, %v358, -inf
    %1116 = vmax.xlane.f32.xlu0 %v1115
    %v1117 = vpop.xlane.xlu0 %1116
    %v1118 = vsel %vm1111, %v405, -inf
    %1119 = vmax.xlane.f32.xlu0 %v1118
    %v1120 = vpop.xlane.xlu0 %1119
    %v1121 = vsel %vm1111, %v408, -inf
    %1122 = vmax.xlane.f32.xlu0 %v1121
    %v1123 = vpop.xlane.xlu0 %1122
    %v1124 = vsel %vm1111, %v455, -inf
    %1125 = vmax.xlane.f32.xlu0 %v1124
    %v1126 = vpop.xlane.xlu0 %1125
    %v1127 = vsel %vm1111, %v458, -inf
    %1128 = vmax.xlane.f32.xlu0 %v1127
    %v1129 = vpop.xlane.xlu0 %1128
    %v1130 = vsel %vm1111, %v505, -inf
    %1131 = vmax.xlane.f32.xlu0 %v1130
    %v1132 = vpop.xlane.xlu0 %1131
    %v1133 = vsel %vm1111, %v508, -inf
    %1134 = vmax.xlane.f32.xlu0 %v1133
    %v1135 = vpop.xlane.xlu0 %1134
    %v1136 = vsel %vm1111, %v555, -inf
    %1137 = vmax.xlane.f32.xlu0 %v1136
    %v1138 = vpop.xlane.xlu0 %1137
    %v1139 = vsel %vm1111, %v558, -inf
    %1140 = vmax.xlane.f32.xlu0 %v1139
    %v1141 = vpop.xlane.xlu0 %1140
    %v1142 = vsel %vm1111, %v605, -inf
    %1143 = vmax.xlane.f32.xlu0 %v1142
    %v1144 = vpop.xlane.xlu0 %1143
    %v1145 = vsel %vm1111, %v608, -inf
    %1146 = vmax.xlane.f32.xlu0 %v1145
    %v1147 = vpop.xlane.xlu0 %1146
    %v1148 = vsel %vm1111, %v655, -inf
    %1149 = vmax.xlane.f32.xlu0 %v1148
    %v1150 = vpop.xlane.xlu0 %1149
    %v1151 = vsel %vm1111, %v658, -inf
    %1152 = vmax.xlane.f32.xlu0 %v1151
    %v1153 = vpop.xlane.xlu0 %1152
    %v1154 = vsel %vm1111, %v705, -inf
    %1155 = vmax.xlane.f32.xlu0 %v1154
    %v1156 = vpop.xlane.xlu0 %1155
    %v1157 = vsel %vm1111, %v708, -inf
    %1158 = vmax.xlane.f32.xlu0 %v1157
    %v1159 = vpop.xlane.xlu0 %1158
    %v1160 = vsel %vm1111, %v755, -inf
    %1161 = vmax.xlane.f32.xlu0 %v1160
    %v1162 = vpop.xlane.xlu0 %1161
    %v1163 = vsel %vm1111, %v758, -inf
    %1164 = vmax.xlane.f32.xlu0 %v1163
    %v1165 = vpop.xlane.xlu0 %1164
    %v1166 = vsel %vm1111, %v805, -inf
    %1167 = vmax.xlane.f32.xlu0 %v1166
    %v1168 = vpop.xlane.xlu0 %1167
    %v1169 = vsel %vm1111, %v808, -inf
    %1170 = vmax.xlane.f32.xlu0 %v1169
    %v1171 = vpop.xlane.xlu0 %1170
    %v1172 = vsel %vm1111, %v855, -inf
    %1173 = vmax.xlane.f32.xlu0 %v1172
    %v1174 = vpop.xlane.xlu0 %1173
    %v1175 = vsel %vm1111, %v858, -inf
    %1176 = vmax.xlane.f32.xlu0 %v1175
    %v1177 = vpop.xlane.xlu0 %1176
    %v1178 = vsel %vm1111, %v905, -inf
    %1179 = vmax.xlane.f32.xlu0 %v1178
    %v1180 = vpop.xlane.xlu0 %1179
    %v1181 = vsel %vm1111, %v908, -inf
    %1182 = vmax.xlane.f32.xlu0 %v1181
    %v1183 = vpop.xlane.xlu0 %1182
    %v1184 = vsel %vm1111, %v955, -inf
    %1185 = vmax.xlane.f32.xlu0 %v1184
    %v1186 = vpop.xlane.xlu0 %1185
    %v1187 = vsel %vm1111, %v958, -inf
    %1188 = vmax.xlane.f32.xlu0 %v1187
    %v1189 = vpop.xlane.xlu0 %1188
    %v1190 = vsel %vm1111, %v1005, -inf
    %1191 = vmax.xlane.f32.xlu0 %v1190
    %v1192 = vpop.xlane.xlu0 %1191
    %v1193 = vsel %vm1111, %v1008, -inf
    %1194 = vmax.xlane.f32.xlu0 %v1193
    %v1195 = vpop.xlane.xlu0 %1194
    %v1196 = vsel %vm1111, %v1055, -inf
    %1197 = vmax.xlane.f32.xlu0 %v1196
    %v1198 = vpop.xlane.xlu0 %1197
    %v1199 = vsel %vm1111, %v1058, -inf
    %1200 = vmax.xlane.f32.xlu0 %v1199
    %v1201 = vpop.xlane.xlu0 %1200
    %v1202 = vsel %vm1111, %v1105, -inf
    %1203 = vmax.xlane.f32.xlu0 %v1202
    %v1204 = vpop.xlane.xlu0 %1203
    %v1205 = vsel %vm1111, %v1108, -inf
    %1206 = vmax.xlane.f32.xlu0 %v1205
    %v1207 = vpop.xlane.xlu0 %1206
    %v1208 = vsub.f32 %v355, %v1114
    %v1209 = vsub.f32 %v358, %v1117
    %v1210 = vsub.f32 %v405, %v1120
    %v1211 = vsub.f32 %v408, %v1123
    %v1212 = vsub.f32 %v455, %v1126
    %v1213 = vsub.f32 %v458, %v1129
    %v1214 = vsub.f32 %v505, %v1132
    %v1215 = vsub.f32 %v508, %v1135
    %v1216 = vsub.f32 %v555, %v1138
    %v1217 = vsub.f32 %v558, %v1141
    %v1218 = vsub.f32 %v605, %v1144
    %v1219 = vsub.f32 %v608, %v1147
    %v1220 = vsub.f32 %v655, %v1150
    %v1221 = vsub.f32 %v658, %v1153
    %v1222 = vsub.f32 %v705, %v1156
    %v1223 = vsub.f32 %v708, %v1159
    %v1224 = vsub.f32 %v755, %v1162
    %v1225 = vsub.f32 %v758, %v1165
    %v1226 = vsub.f32 %v805, %v1168
    %v1227 = vsub.f32 %v808, %v1171
    %v1228 = vsub.f32 %v855, %v1174
    %v1229 = vsub.f32 %v858, %v1177
    %v1230 = vsub.f32 %v905, %v1180
    %v1231 = vsub.f32 %v908, %v1183
    %v1232 = vsub.f32 %v955, %v1186
    %v1233 = vsub.f32 %v958, %v1189
    %v1234 = vsub.f32 %v1005, %v1192
    %v1235 = vsub.f32 %v1008, %v1195
    %v1236 = vsub.f32 %v1055, %v1198
    %v1237 = vsub.f32 %v1058, %v1201
    %v1238 = vsub.f32 %v1105, %v1204
    %v1239 = vsub.f32 %v1108, %v1207
    %v1240 = vmul.f32 %v1208, 1.442695
    %v1241 = vpow.pop %v1240
    %v1242 = vmul.f32 %v1209, 1.442695
    %v1243 = vpow.pop %v1242
    %v1244 = vmul.f32 %v1210, 1.442695
    %v1245 = vpow.pop %v1244
    %v1246 = vmul.f32 %v1211, 1.442695
    %v1247 = vpow.pop %v1246
    %v1248 = vmul.f32 %v1212, 1.442695
    %v1249 = vpow.pop %v1248
    %v1250 = vmul.f32 %v1213, 1.442695
    %v1251 = vpow.pop %v1250
    %v1252 = vmul.f32 %v1214, 1.442695
    %v1253 = vpow.pop %v1252
    %v1254 = vmul.f32 %v1215, 1.442695
    %v1255 = vpow.pop %v1254
    %v1256 = vmul.f32 %v1216, 1.442695
    %v1257 = vpow.pop %v1256
    %v1258 = vmul.f32 %v1217, 1.442695
    %v1259 = vpow.pop %v1258
    %v1260 = vmul.f32 %v1218, 1.442695
    %v1261 = vpow.pop %v1260
    %v1262 = vmul.f32 %v1219, 1.442695
    %v1263 = vpow.pop %v1262
    %v1264 = vmul.f32 %v1220, 1.442695
    %v1265 = vpow.pop %v1264
    %v1266 = vmul.f32 %v1221, 1.442695
    %v1267 = vpow.pop %v1266
    %v1268 = vmul.f32 %v1222, 1.442695
    %v1269 = vpow.pop %v1268
    %v1270 = vmul.f32 %v1223, 1.442695
    %v1271 = vpow.pop %v1270
    %v1272 = vmul.f32 %v1224, 1.442695
    %v1273 = vpow.pop %v1272
    %v1274 = vmul.f32 %v1225, 1.442695
    %v1275 = vpow.pop %v1274
    %v1276 = vmul.f32 %v1226, 1.442695
    %v1277 = vpow.pop %v1276
    %v1278 = vmul.f32 %v1227, 1.442695
    %v1279 = vpow.pop %v1278
    %v1280 = vmul.f32 %v1228, 1.442695
    %v1281 = vpow.pop %v1280
    %v1282 = vmul.f32 %v1229, 1.442695
    %v1283 = vpow.pop %v1282
    %v1284 = vmul.f32 %v1230, 1.442695
    %v1285 = vpow.pop %v1284
    %v1286 = vmul.f32 %v1231, 1.442695
    %v1287 = vpow.pop %v1286
    %v1288 = vmul.f32 %v1232, 1.442695
    %v1289 = vpow.pop %v1288
    %v1290 = vmul.f32 %v1233, 1.442695
    %v1291 = vpow.pop %v1290
    %v1292 = vmul.f32 %v1234, 1.442695
    %v1293 = vpow.pop %v1292
    %v1294 = vmul.f32 %v1235, 1.442695
    %v1295 = vpow.pop %v1294
    %v1296 = vmul.f32 %v1236, 1.442695
    %v1297 = vpow.pop %v1296
    %v1298 = vmul.f32 %v1237, 1.442695
    %v1299 = vpow.pop %v1298
    %v1300 = vmul.f32 %v1238, 1.442695
    %v1301 = vpow.pop %v1300
    %v1302 = vmul.f32 %v1239, 1.442695
    %v1303 = vpow.pop %v1302
    %v1304 = vsel %vm1111, %v1241, 0.0
    %1305 = vadd.xlane.f32.xlu0 %v1304
    %v1306 = vpop.xlane.xlu0 %1305
    %v1307 = vsel %vm1111, %v1243, 0.0
    %1308 = vadd.xlane.f32.xlu0 %v1307
    %v1309 = vpop.xlane.xlu0 %1308
    %v1310 = vsel %vm1111, %v1245, 0.0
    %1311 = vadd.xlane.f32.xlu0 %v1310
    %v1312 = vpop.xlane.xlu0 %1311
    %v1313 = vsel %vm1111, %v1247, 0.0
    %1314 = vadd.xlane.f32.xlu0 %v1313
    %v1315 = vpop.xlane.xlu0 %1314
    %v1316 = vsel %vm1111, %v1249, 0.0
    %1317 = vadd.xlane.f32.xlu0 %v1316
    %v1318 = vpop.xlane.xlu0 %1317
    %v1319 = vsel %vm1111, %v1251, 0.0
    %1320 = vadd.xlane.f32.xlu0 %v1319
    %v1321 = vpop.xlane.xlu0 %1320
    %v1322 = vsel %vm1111, %v1253, 0.0
    %1323 = vadd.xlane.f32.xlu0 %v1322
    %v1324 = vpop.xlane.xlu0 %1323
    %v1325 = vsel %vm1111, %v1255, 0.0
    %1326 = vadd.xlane.f32.xlu0 %v1325
    %v1327 = vpop.xlane.xlu0 %1326
    %v1328 = vsel %vm1111, %v1257, 0.0
    %1329 = vadd.xlane.f32.xlu0 %v1328
    %v1330 = vpop.xlane.xlu0 %1329
    %v1331 = vsel %vm1111, %v1259, 0.0
    %1332 = vadd.xlane.f32.xlu0 %v1331
    %v1333 = vpop.xlane.xlu0 %1332
    %v1334 = vsel %vm1111, %v1261, 0.0
    %1335 = vadd.xlane.f32.xlu0 %v1334
    %v1336 = vpop.xlane.xlu0 %1335
    %v1337 = vsel %vm1111, %v1263, 0.0
    %1338 = vadd.xlane.f32.xlu0 %v1337
    %v1339 = vpop.xlane.xlu0 %1338
    %v1340 = vsel %vm1111, %v1265, 0.0
    %1341 = vadd.xlane.f32.xlu0 %v1340
    %v1342 = vpop.xlane.xlu0 %1341
    %v1343 = vsel %vm1111, %v1267, 0.0
    %1344 = vadd.xlane.f32.xlu0 %v1343
    %v1345 = vpop.xlane.xlu0 %1344
    %v1346 = vsel %vm1111, %v1269, 0.0
    %1347 = vadd.xlane.f32.xlu0 %v1346
    %v1348 = vpop.xlane.xlu0 %1347
    %v1349 = vsel %vm1111, %v1271, 0.0
    %1350 = vadd.xlane.f32.xlu0 %v1349
    %v1351 = vpop.xlane.xlu0 %1350
    %v1352 = vsel %vm1111, %v1273, 0.0
    %1353 = vadd.xlane.f32.xlu0 %v1352
    %v1354 = vpop.xlane.xlu0 %1353
    %v1355 = vsel %vm1111, %v1275, 0.0
    %1356 = vadd.xlane.f32.xlu0 %v1355
    %v1357 = vpop.xlane.xlu0 %1356
    %v1358 = vsel %vm1111, %v1277, 0.0
    %1359 = vadd.xlane.f32.xlu0 %v1358
    %v1360 = vpop.xlane.xlu0 %1359
    %v1361 = vsel %vm1111, %v1279, 0.0
    %1362 = vadd.xlane.f32.xlu0 %v1361
    %v1363 = vpop.xlane.xlu0 %1362
    %v1364 = vsel %vm1111, %v1281, 0.0
    %1365 = vadd.xlane.f32.xlu0 %v1364
    %v1366 = vpop.xlane.xlu0 %1365
    %v1367 = vsel %vm1111, %v1283, 0.0
    %1368 = vadd.xlane.f32.xlu0 %v1367
    %v1369 = vpop.xlane.xlu0 %1368
    %v1370 = vsel %vm1111, %v1285, 0.0
    %1371 = vadd.xlane.f32.xlu0 %v1370
    %v1372 = vpop.xlane.xlu0 %1371
    %v1373 = vsel %vm1111, %v1287, 0.0
    %1374 = vadd.xlane.f32.xlu0 %v1373
    %v1375 = vpop.xlane.xlu0 %1374
    %v1376 = vsel %vm1111, %v1289, 0.0
    %1377 = vadd.xlane.f32.xlu0 %v1376
    %v1378 = vpop.xlane.xlu0 %1377
    %v1379 = vsel %vm1111, %v1291, 0.0
    %1380 = vadd.xlane.f32.xlu0 %v1379
    %v1381 = vpop.xlane.xlu0 %1380
    %v1382 = vsel %vm1111, %v1293, 0.0
    %1383 = vadd.xlane.f32.xlu0 %v1382
    %v1384 = vpop.xlane.xlu0 %1383
    %v1385 = vsel %vm1111, %v1295, 0.0
    %1386 = vadd.xlane.f32.xlu0 %v1385
    %v1387 = vpop.xlane.xlu0 %1386
    %v1388 = vsel %vm1111, %v1297, 0.0
    %1389 = vadd.xlane.f32.xlu0 %v1388
    %v1390 = vpop.xlane.xlu0 %1389
    %v1391 = vsel %vm1111, %v1299, 0.0
    %1392 = vadd.xlane.f32.xlu0 %v1391
    %v1393 = vpop.xlane.xlu0 %1392
    %v1394 = vsel %vm1111, %v1301, 0.0
    %1395 = vadd.xlane.f32.xlu0 %v1394
    %v1396 = vpop.xlane.xlu0 %1395
    %v1397 = vsel %vm1111, %v1303, 0.0
    %1398 = vadd.xlane.f32.xlu0 %v1397
    %v1399 = vpop.xlane.xlu0 %1398
    %v1400 = vpack.c.bf16 %v1243, %v1241
    %v1401 = vpack.c.bf16 %v1247, %v1245
    %v1402 = vpack.c.bf16 %v1251, %v1249
    %v1403 = vpack.c.bf16 %v1255, %v1253
    %v1404 = vpack.c.bf16 %v1259, %v1257
    %v1405 = vpack.c.bf16 %v1263, %v1261
    %v1406 = vpack.c.bf16 %v1267, %v1265
    %v1407 = vpack.c.bf16 %v1271, %v1269
    %v1408 = vpack.c.bf16 %v1275, %v1273
    %v1409 = vpack.c.bf16 %v1279, %v1277
    %v1410 = vpack.c.bf16 %v1283, %v1281
    %v1411 = vpack.c.bf16 %v1287, %v1285
    %v1412 = vpack.c.bf16 %v1291, %v1289
    %v1413 = vpack.c.bf16 %v1295, %v1293
    %v1414 = vpack.c.bf16 %v1299, %v1297
    %v1415 = vpack.c.bf16 %v1303, %v1301
    %1416 = vrot.lane.b32.xlu0 %v294, 64
    %v1417 = vpop.permute.xlu0 %1416
    %v1420 = vsel %vm1111, %v1400, 0
    %1422 = vmatprep.subr.bf16.mxu0 0
    %1423 = vmatpush1.bf16.msra.mxu0 %v1417
    %1424 = vmatprep.subr.bf16.mxu0 0
    %1425 = vmatpush1.bf16.msra.mxu0 0
    %1426 = vmatprep.subr.bf16.mxu0 0
    %1427 = vmatpush1.bf16.msra.mxu0 0
    %1428 = vmatprep.subr.bf16.mxu0 0
    %1429 = vmatpush1.bf16.msra.mxu0 0
    %1430 = vmatprep.subr.bf16.mxu0 0
    %1431 = vmatpush1.bf16.msra.mxu0 0
    %1432 = vmatprep.subr.bf16.mxu0 0
    %1433 = vmatpush1.bf16.msra.mxu0 0
    %1434 = vmatprep.subr.bf16.mxu0 0
    %1435 = vmatpush1.bf16.msra.mxu0 0
    %1436 = vmatprep.subr.bf16.mxu0 0
    %1437 = vmatpush1.bf16.msra.mxu0 0
    %1438 = vmatprep.subr.bf16.mxu0 0
    %1439 = vmatpush1.bf16.msra.mxu0 0
    %1440 = vmatprep.subr.bf16.mxu0 0
    %1441 = vmatpush1.bf16.msra.mxu0 0
    %1442 = vmatprep.subr.bf16.mxu0 0
    %1443 = vmatpush1.bf16.msra.mxu0 0
    %1444 = vmatprep.subr.bf16.mxu0 0
    %1445 = vmatpush1.bf16.msra.mxu0 0
    %1446 = vmatprep.subr.bf16.mxu0 0
    %1447 = vmatpush1.bf16.msra.mxu0 0
    %1448 = vmatprep.subr.bf16.mxu0 0
    %1449 = vmatpush1.bf16.msra.mxu0 0
    %1450 = vmatprep.subr.bf16.mxu0 0
    %1451 = vmatpush1.bf16.msra.mxu0 0
    %1452 = vmatprep.subr.bf16.mxu0 0
    %1453 = vmatpush1.bf16.msra.mxu0 0
    %1454 = vmatprep.mubr.bf16.mxu0 0
    %1455 = vmatmul.mubr.bf16.gmra.mrb[0].mxu0 %v1420
    %v1456 = vpop.f32.mrb[0].mxu0
    %v1457 = vadd.f32 0.0, %v1456
    %v1458 = vpop.f32.mrb[0].mxu0
    %v1459 = vpop.f32.mrb[0].mxu0
    %v1460 = vadd.f32 0.0, %v1459
    %v1461 = vpop.f32.mrb[0].mxu0
    %1462 = vdwg.mxu0
    %1463 = vrot.lane.b32.xlu0 %v295, 64
    %v1464 = vpop.permute.xlu0 %1463
    %v1467 = vsel %vm1111, %v1401, 0
    %1469 = vmatprep.subr.bf16.mxu0 0
    %1470 = vmatpush1.bf16.msra.mxu0 %v1464
    %1471 = vmatprep.subr.bf16.mxu0 0
    %1472 = vmatpush1.bf16.msra.mxu0 0
    %1473 = vmatprep.subr.bf16.mxu0 0
    %1474 = vmatpush1.bf16.msra.mxu0 0
    %1475 = vmatprep.subr.bf16.mxu0 0
    %1476 = vmatpush1.bf16.msra.mxu0 0
    %1477 = vmatprep.subr.bf16.mxu0 0
    %1478 = vmatpush1.bf16.msra.mxu0 0
    %1479 = vmatprep.subr.bf16.mxu0 0
    %1480 = vmatpush1.bf16.msra.mxu0 0
    %1481 = vmatprep.subr.bf16.mxu0 0
    %1482 = vmatpush1.bf16.msra.mxu0 0
    %1483 = vmatprep.subr.bf16.mxu0 0
    %1484 = vmatpush1.bf16.msra.mxu0 0
    %1485 = vmatprep.subr.bf16.mxu0 0
    %1486 = vmatpush1.bf16.msra.mxu0 0
    %1487 = vmatprep.subr.bf16.mxu0 0
    %1488 = vmatpush1.bf16.msra.mxu0 0
    %1489 = vmatprep.subr.bf16.mxu0 0
    %1490 = vmatpush1.bf16.msra.mxu0 0
    %1491 = vmatprep.subr.bf16.mxu0 0
    %1492 = vmatpush1.bf16.msra.mxu0 0
    %1493 = vmatprep.subr.bf16.mxu0 0
    %1494 = vmatpush1.bf16.msra.mxu0 0
    %1495 = vmatprep.subr.bf16.mxu0 0
    %1496 = vmatpush1.bf16.msra.mxu0 0
    %1497 = vmatprep.subr.bf16.mxu0 0
    %1498 = vmatpush1.bf16.msra.mxu0 0
    %1499 = vmatprep.subr.bf16.mxu0 0
    %1500 = vmatpush1.bf16.msra.mxu0 0
    %1501 = vmatprep.mubr.bf16.mxu0 0
    %1502 = vmatmul.mubr.bf16.gmra.mrb[0].mxu0 %v1467
    %v1503 = vpop.f32.mrb[0].mxu0
    %v1504 = vadd.f32 0.0, %v1503
    %v1505 = vpop.f32.mrb[0].mxu0
    %v1506 = vpop.f32.mrb[0].mxu0
    %v1507 = vadd.f32 0.0, %v1506
    %v1508 = vpop.f32.mrb[0].mxu0
    %1509 = vdwg.mxu0
    %1510 = vrot.lane.b32.xlu0 %v296, 64
    %v1511 = vpop.permute.xlu0 %1510
    %v1514 = vsel %vm1111, %v1402, 0
    %1516 = vmatprep.subr.bf16.mxu0 0
    %1517 = vmatpush1.bf16.msra.mxu0 %v1511
    %1518 = vmatprep.subr.bf16.mxu0 0
    %1519 = vmatpush1.bf16.msra.mxu0 0
    %1520 = vmatprep.subr.bf16.mxu0 0
    %1521 = vmatpush1.bf16.msra.mxu0 0
    %1522 = vmatprep.subr.bf16.mxu0 0
    %1523 = vmatpush1.bf16.msra.mxu0 0
    %1524 = vmatprep.subr.bf16.mxu0 0
    %1525 = vmatpush1.bf16.msra.mxu0 0
    %1526 = vmatprep.subr.bf16.mxu0 0
    %1527 = vmatpush1.bf16.msra.mxu0 0
    %1528 = vmatprep.subr.bf16.mxu0 0
    %1529 = vmatpush1.bf16.msra.mxu0 0
    %1530 = vmatprep.subr.bf16.mxu0 0
    %1531 = vmatpush1.bf16.msra.mxu0 0
    %1532 = vmatprep.subr.bf16.mxu0 0
    %1533 = vmatpush1.bf16.msra.mxu0 0
    %1534 = vmatprep.subr.bf16.mxu0 0
    %1535 = vmatpush1.bf16.msra.mxu0 0
    %1536 = vmatprep.subr.bf16.mxu0 0
    %1537 = vmatpush1.bf16.msra.mxu0 0
    %1538 = vmatprep.subr.bf16.mxu0 0
    %1539 = vmatpush1.bf16.msra.mxu0 0
    %1540 = vmatprep.subr.bf16.mxu0 0
    %1541 = vmatpush1.bf16.msra.mxu0 0
    %1542 = vmatprep.subr.bf16.mxu0 0
    %1543 = vmatpush1.bf16.msra.mxu0 0
    %1544 = vmatprep.subr.bf16.mxu0 0
    %1545 = vmatpush1.bf16.msra.mxu0 0
    %1546 = vmatprep.subr.bf16.mxu0 0
    %1547 = vmatpush1.bf16.msra.mxu0 0
    %1548 = vmatprep.mubr.bf16.mxu0 0
    %1549 = vmatmul.mubr.bf16.gmra.mrb[0].mxu0 %v1514
    %v1550 = vpop.f32.mrb[0].mxu0
    %v1551 = vadd.f32 0.0, %v1550
    %v1552 = vpop.f32.mrb[0].mxu0
    %v1553 = vpop.f32.mrb[0].mxu0
    %v1554 = vadd.f32 0.0, %v1553
    %v1555 = vpop.f32.mrb[0].mxu0
    %1556 = vdwg.mxu0
    %1557 = vrot.lane.b32.xlu0 %v297, 64
    %v1558 = vpop.permute.xlu0 %1557
    %v1561 = vsel %vm1111, %v1403, 0
    %1563 = vmatprep.subr.bf16.mxu0 0
    %1564 = vmatpush1.bf16.msra.mxu0 %v1558
    %1565 = vmatprep.subr.bf16.mxu0 0
    %1566 = vmatpush1.bf16.msra.mxu0 0
    %1567 = vmatprep.subr.bf16.mxu0 0
    %1568 = vmatpush1.bf16.msra.mxu0 0
    %1569 = vmatprep.subr.bf16.mxu0 0
    %1570 = vmatpush1.bf16.msra.mxu0 0
    %1571 = vmatprep.subr.bf16.mxu0 0
    %1572 = vmatpush1.bf16.msra.mxu0 0
    %1573 = vmatprep.subr.bf16.mxu0 0
    %1574 = vmatpush1.bf16.msra.mxu0 0
    %1575 = vmatprep.subr.bf16.mxu0 0
    %1576 = vmatpush1.bf16.msra.mxu0 0
    %1577 = vmatprep.subr.bf16.mxu0 0
    %1578 = vmatpush1.bf16.msra.mxu0 0
    %1579 = vmatprep.subr.bf16.mxu0 0
    %1580 = vmatpush1.bf16.msra.mxu0 0
    %1581 = vmatprep.subr.bf16.mxu0 0
    %1582 = vmatpush1.bf16.msra.mxu0 0
    %1583 = vmatprep.subr.bf16.mxu0 0
    %1584 = vmatpush1.bf16.msra.mxu0 0
    %1585 = vmatprep.subr.bf16.mxu0 0
    %1586 = vmatpush1.bf16.msra.mxu0 0
    %1587 = vmatprep.subr.bf16.mxu0 0
    %1588 = vmatpush1.bf16.msra.mxu0 0
    %1589 = vmatprep.subr.bf16.mxu0 0
    %1590 = vmatpush1.bf16.msra.mxu0 0
    %1591 = vmatprep.subr.bf16.mxu0 0
    %1592 = vmatpush1.bf16.msra.mxu0 0
    %1593 = vmatprep.subr.bf16.mxu0 0
    %1594 = vmatpush1.bf16.msra.mxu0 0
    %1595 = vmatprep.mubr.bf16.mxu0 0
    %1596 = vmatmul.mubr.bf16.gmra.mrb[0].mxu0 %v1561
    %v1597 = vpop.f32.mrb[0].mxu0
    %v1598 = vadd.f32 0.0, %v1597
    %v1599 = vpop.f32.mrb[0].mxu0
    %v1600 = vpop.f32.mrb[0].mxu0
    %v1601 = vadd.f32 0.0, %v1600
    %v1602 = vpop.f32.mrb[0].mxu0
    %1603 = vdwg.mxu0
    %1604 = vrot.lane.b32.xlu0 %v298, 64
    %v1605 = vpop.permute.xlu0 %1604
    %v1608 = vsel %vm1111, %v1404, 0
    %1610 = vmatprep.subr.bf16.mxu0 0
    %1611 = vmatpush1.bf16.msra.mxu0 %v1605
    %1612 = vmatprep.subr.bf16.mxu0 0
    %1613 = vmatpush1.bf16.msra.mxu0 0
    %1614 = vmatprep.subr.bf16.mxu0 0
    %1615 = vmatpush1.bf16.msra.mxu0 0
    %1616 = vmatprep.subr.bf16.mxu0 0
    %1617 = vmatpush1.bf16.msra.mxu0 0
    %1618 = vmatprep.subr.bf16.mxu0 0
    %1619 = vmatpush1.bf16.msra.mxu0 0
    %1620 = vmatprep.subr.bf16.mxu0 0
    %1621 = vmatpush1.bf16.msra.mxu0 0
    %1622 = vmatprep.subr.bf16.mxu0 0
    %1623 = vmatpush1.bf16.msra.mxu0 0
    %1624 = vmatprep.subr.bf16.mxu0 0
    %1625 = vmatpush1.bf16.msra.mxu0 0
    %1626 = vmatprep.subr.bf16.mxu0 0
    %1627 = vmatpush1.bf16.msra.mxu0 0
    %1628 = vmatprep.subr.bf16.mxu0 0
    %1629 = vmatpush1.bf16.msra.mxu0 0
    %1630 = vmatprep.subr.bf16.mxu0 0
    %1631 = vmatpush1.bf16.msra.mxu0 0
    %1632 = vmatprep.subr.bf16.mxu0 0
    %1633 = vmatpush1.bf16.msra.mxu0 0
    %1634 = vmatprep.subr.bf16.mxu0 0
    %1635 = vmatpush1.bf16.msra.mxu0 0
    %1636 = vmatprep.subr.bf16.mxu0 0
    %1637 = vmatpush1.bf16.msra.mxu0 0
    %1638 = vmatprep.subr.bf16.mxu0 0
    %1639 = vmatpush1.bf16.msra.mxu0 0
    %1640 = vmatprep.subr.bf16.mxu0 0
    %1641 = vmatpush1.bf16.msra.mxu0 0
    %1642 = vmatprep.mubr.bf16.mxu0 0
    %1643 = vmatmul.mubr.bf16.gmra.mrb[0].mxu0 %v1608
    %v1644 = vpop.f32.mrb[0].mxu0
    %v1645 = vadd.f32 0.0, %v1644
    %v1646 = vpop.f32.mrb[0].mxu0
    %v1647 = vpop.f32.mrb[0].mxu0
    %v1648 = vadd.f32 0.0, %v1647
    %v1649 = vpop.f32.mrb[0].mxu0
    %1650 = vdwg.mxu0
    %1651 = vrot.lane.b32.xlu0 %v299, 64
    %v1652 = vpop.permute.xlu0 %1651
    %v1655 = vsel %vm1111, %v1405, 0
    %1657 = vmatprep.subr.bf16.mxu0 0
    %1658 = vmatpush1.bf16.msra.mxu0 %v1652
    %1659 = vmatprep.subr.bf16.mxu0 0
    %1660 = vmatpush1.bf16.msra.mxu0 0
    %1661 = vmatprep.subr.bf16.mxu0 0
    %1662 = vmatpush1.bf16.msra.mxu0 0
    %1663 = vmatprep.subr.bf16.mxu0 0
    %1664 = vmatpush1.bf16.msra.mxu0 0
    %1665 = vmatprep.subr.bf16.mxu0 0
    %1666 = vmatpush1.bf16.msra.mxu0 0
    %1667 = vmatprep.subr.bf16.mxu0 0
    %1668 = vmatpush1.bf16.msra.mxu0 0
    %1669 = vmatprep.subr.bf16.mxu0 0
    %1670 = vmatpush1.bf16.msra.mxu0 0
    %1671 = vmatprep.subr.bf16.mxu0 0
    %1672 = vmatpush1.bf16.msra.mxu0 0
    %1673 = vmatprep.subr.bf16.mxu0 0
    %1674 = vmatpush1.bf16.msra.mxu0 0
    %1675 = vmatprep.subr.bf16.mxu0 0
    %1676 = vmatpush1.bf16.msra.mxu0 0
    %1677 = vmatprep.subr.bf16.mxu0 0
    %1678 = vmatpush1.bf16.msra.mxu0 0
    %1679 = vmatprep.subr.bf16.mxu0 0
    %1680 = vmatpush1.bf16.msra.mxu0 0
    %1681 = vmatprep.subr.bf16.mxu0 0
    %1682 = vmatpush1.bf16.msra.mxu0 0
    %1683 = vmatprep.subr.bf16.mxu0 0
    %1684 = vmatpush1.bf16.msra.mxu0 0
    %1685 = vmatprep.subr.bf16.mxu0 0
    %1686 = vmatpush1.bf16.msra.mxu0 0
    %1687 = vmatprep.subr.bf16.mxu0 0
    %1688 = vmatpush1.bf16.msra.mxu0 0
    %1689 = vmatprep.mubr.bf16.mxu0 0
    %1690 = vmatmul.mubr.bf16.gmra.mrb[0].mxu0 %v1655
    %v1691 = vpop.f32.mrb[0].mxu0
    %v1692 = vadd.f32 0.0, %v1691
    %v1693 = vpop.f32.mrb[0].mxu0
    %v1694 = vpop.f32.mrb[0].mxu0
    %v1695 = vadd.f32 0.0, %v1694
    %v1696 = vpop.f32.mrb[0].mxu0
    %1697 = vdwg.mxu0
    %1698 = vrot.lane.b32.xlu0 %v300, 64
    %v1699 = vpop.permute.xlu0 %1698
    %v1702 = vsel %vm1111, %v1406, 0
    %1704 = vmatprep.subr.bf16.mxu0 0
    %1705 = vmatpush1.bf16.msra.mxu0 %v1699
    %1706 = vmatprep.subr.bf16.mxu0 0
    %1707 = vmatpush1.bf16.msra.mxu0 0
    %1708 = vmatprep.subr.bf16.mxu0 0
    %1709 = vmatpush1.bf16.msra.mxu0 0
    %1710 = vmatprep.subr.bf16.mxu0 0
    %1711 = vmatpush1.bf16.msra.mxu0 0
    %1712 = vmatprep.subr.bf16.mxu0 0
    %1713 = vmatpush1.bf16.msra.mxu0 0
    %1714 = vmatprep.subr.bf16.mxu0 0
    %1715 = vmatpush1.bf16.msra.mxu0 0
    %1716 = vmatprep.subr.bf16.mxu0 0
    %1717 = vmatpush1.bf16.msra.mxu0 0
    %1718 = vmatprep.subr.bf16.mxu0 0
    %1719 = vmatpush1.bf16.msra.mxu0 0
    %1720 = vmatprep.subr.bf16.mxu0 0
    %1721 = vmatpush1.bf16.msra.mxu0 0
    %1722 = vmatprep.subr.bf16.mxu0 0
    %1723 = vmatpush1.bf16.msra.mxu0 0
    %1724 = vmatprep.subr.bf16.mxu0 0
    %1725 = vmatpush1.bf16.msra.mxu0 0
    %1726 = vmatprep.subr.bf16.mxu0 0
    %1727 = vmatpush1.bf16.msra.mxu0 0
    %1728 = vmatprep.subr.bf16.mxu0 0
    %1729 = vmatpush1.bf16.msra.mxu0 0
    %1730 = vmatprep.subr.bf16.mxu0 0
    %1731 = vmatpush1.bf16.msra.mxu0 0
    %1732 = vmatprep.subr.bf16.mxu0 0
    %1733 = vmatpush1.bf16.msra.mxu0 0
    %1734 = vmatprep.subr.bf16.mxu0 0
    %1735 = vmatpush1.bf16.msra.mxu0 0
    %1736 = vmatprep.mubr.bf16.mxu0 0
    %1737 = vmatmul.mubr.bf16.gmra.mrb[0].mxu0 %v1702
    %v1738 = vpop.f32.mrb[0].mxu0
    %v1739 = vadd.f32 0.0, %v1738
    %v1740 = vpop.f32.mrb[0].mxu0
    %v1741 = vpop.f32.mrb[0].mxu0
    %v1742 = vadd.f32 0.0, %v1741
    %v1743 = vpop.f32.mrb[0].mxu0
    %1744 = vdwg.mxu0
    %1745 = vrot.lane.b32.xlu0 %v301, 64
    %v1746 = vpop.permute.xlu0 %1745
    %v1749 = vsel %vm1111, %v1407, 0
    %1751 = vmatprep.subr.bf16.mxu0 0
    %1752 = vmatpush1.bf16.msra.mxu0 %v1746
    %1753 = vmatprep.subr.bf16.mxu0 0
    %1754 = vmatpush1.bf16.msra.mxu0 0
    %1755 = vmatprep.subr.bf16.mxu0 0
    %1756 = vmatpush1.bf16.msra.mxu0 0
    %1757 = vmatprep.subr.bf16.mxu0 0
    %1758 = vmatpush1.bf16.msra.mxu0 0
    %1759 = vmatprep.subr.bf16.mxu0 0
    %1760 = vmatpush1.bf16.msra.mxu0 0
    %1761 = vmatprep.subr.bf16.mxu0 0
    %1762 = vmatpush1.bf16.msra.mxu0 0
    %1763 = vmatprep.subr.bf16.mxu0 0
    %1764 = vmatpush1.bf16.msra.mxu0 0
    %1765 = vmatprep.subr.bf16.mxu0 0
    %1766 = vmatpush1.bf16.msra.mxu0 0
    %1767 = vmatprep.subr.bf16.mxu0 0
    %1768 = vmatpush1.bf16.msra.mxu0 0
    %1769 = vmatprep.subr.bf16.mxu0 0
    %1770 = vmatpush1.bf16.msra.mxu0 0
    %1771 = vmatprep.subr.bf16.mxu0 0
    %1772 = vmatpush1.bf16.msra.mxu0 0
    %1773 = vmatprep.subr.bf16.mxu0 0
    %1774 = vmatpush1.bf16.msra.mxu0 0
    %1775 = vmatprep.subr.bf16.mxu0 0
    %1776 = vmatpush1.bf16.msra.mxu0 0
    %1777 = vmatprep.subr.bf16.mxu0 0
    %1778 = vmatpush1.bf16.msra.mxu0 0
    %1779 = vmatprep.subr.bf16.mxu0 0
    %1780 = vmatpush1.bf16.msra.mxu0 0
    %1781 = vmatprep.subr.bf16.mxu0 0
    %1782 = vmatpush1.bf16.msra.mxu0 0
    %1783 = vmatprep.mubr.bf16.mxu0 0
    %1784 = vmatmul.mubr.bf16.gmra.mrb[0].mxu0 %v1749
    %v1785 = vpop.f32.mrb[0].mxu0
    %v1786 = vadd.f32 0.0, %v1785
    %v1787 = vpop.f32.mrb[0].mxu0
    %v1788 = vpop.f32.mrb[0].mxu0
    %v1789 = vadd.f32 0.0, %v1788
    %v1790 = vpop.f32.mrb[0].mxu0
    %1791 = vdwg.mxu0
    %1792 = vrot.lane.b32.xlu0 %v302, 64
    %v1793 = vpop.permute.xlu0 %1792
    %v1796 = vsel %vm1111, %v1408, 0
    %1798 = vmatprep.subr.bf16.mxu0 0
    %1799 = vmatpush1.bf16.msra.mxu0 %v1793
    %1800 = vmatprep.subr.bf16.mxu0 0
    %1801 = vmatpush1.bf16.msra.mxu0 0
    %1802 = vmatprep.subr.bf16.mxu0 0
    %1803 = vmatpush1.bf16.msra.mxu0 0
    %1804 = vmatprep.subr.bf16.mxu0 0
    %1805 = vmatpush1.bf16.msra.mxu0 0
    %1806 = vmatprep.subr.bf16.mxu0 0
    %1807 = vmatpush1.bf16.msra.mxu0 0
    %1808 = vmatprep.subr.bf16.mxu0 0
    %1809 = vmatpush1.bf16.msra.mxu0 0
    %1810 = vmatprep.subr.bf16.mxu0 0
    %1811 = vmatpush1.bf16.msra.mxu0 0
    %1812 = vmatprep.subr.bf16.mxu0 0
    %1813 = vmatpush1.bf16.msra.mxu0 0
    %1814 = vmatprep.subr.bf16.mxu0 0
    %1815 = vmatpush1.bf16.msra.mxu0 0
    %1816 = vmatprep.subr.bf16.mxu0 0
    %1817 = vmatpush1.bf16.msra.mxu0 0
    %1818 = vmatprep.subr.bf16.mxu0 0
    %1819 = vmatpush1.bf16.msra.mxu0 0
    %1820 = vmatprep.subr.bf16.mxu0 0
    %1821 = vmatpush1.bf16.msra.mxu0 0
    %1822 = vmatprep.subr.bf16.mxu0 0
    %1823 = vmatpush1.bf16.msra.mxu0 0
    %1824 = vmatprep.subr.bf16.mxu0 0
    %1825 = vmatpush1.bf16.msra.mxu0 0
    %1826 = vmatprep.subr.bf16.mxu0 0
    %1827 = vmatpush1.bf16.msra.mxu0 0
    %1828 = vmatprep.subr.bf16.mxu0 0
    %1829 = vmatpush1.bf16.msra.mxu0 0
    %1830 = vmatprep.mubr.bf16.mxu0 0
    %1831 = vmatmul.mubr.bf16.gmra.mrb[0].mxu0 %v1796
    %v1832 = vpop.f32.mrb[0].mxu0
    %v1833 = vadd.f32 0.0, %v1832
    %v1834 = vpop.f32.mrb[0].mxu0
    %v1835 = vpop.f32.mrb[0].mxu0
    %v1836 = vadd.f32 0.0, %v1835
    %v1837 = vpop.f32.mrb[0].mxu0
    %1838 = vdwg.mxu0
    %1839 = vrot.lane.b32.xlu0 %v303, 64
    %v1840 = vpop.permute.xlu0 %1839
    %v1843 = vsel %vm1111, %v1409, 0
    %1845 = vmatprep.subr.bf16.mxu0 0
    %1846 = vmatpush1.bf16.msra.mxu0 %v1840
    %1847 = vmatprep.subr.bf16.mxu0 0
    %1848 = vmatpush1.bf16.msra.mxu0 0
    %1849 = vmatprep.subr.bf16.mxu0 0
    %1850 = vmatpush1.bf16.msra.mxu0 0
    %1851 = vmatprep.subr.bf16.mxu0 0
    %1852 = vmatpush1.bf16.msra.mxu0 0
    %1853 = vmatprep.subr.bf16.mxu0 0
    %1854 = vmatpush1.bf16.msra.mxu0 0
    %1855 = vmatprep.subr.bf16.mxu0 0
    %1856 = vmatpush1.bf16.msra.mxu0 0
    %1857 = vmatprep.subr.bf16.mxu0 0
    %1858 = vmatpush1.bf16.msra.mxu0 0
    %1859 = vmatprep.subr.bf16.mxu0 0
    %1860 = vmatpush1.bf16.msra.mxu0 0
    %1861 = vmatprep.subr.bf16.mxu0 0
    %1862 = vmatpush1.bf16.msra.mxu0 0
    %1863 = vmatprep.subr.bf16.mxu0 0
    %1864 = vmatpush1.bf16.msra.mxu0 0
    %1865 = vmatprep.subr.bf16.mxu0 0
    %1866 = vmatpush1.bf16.msra.mxu0 0
    %1867 = vmatprep.subr.bf16.mxu0 0
    %1868 = vmatpush1.bf16.msra.mxu0 0
    %1869 = vmatprep.subr.bf16.mxu0 0
    %1870 = vmatpush1.bf16.msra.mxu0 0
    %1871 = vmatprep.subr.bf16.mxu0 0
    %1872 = vmatpush1.bf16.msra.mxu0 0
    %1873 = vmatprep.subr.bf16.mxu0 0
    %1874 = vmatpush1.bf16.msra.mxu0 0
    %1875 = vmatprep.subr.bf16.mxu0 0
    %1876 = vmatpush1.bf16.msra.mxu0 0
    %1877 = vmatprep.mubr.bf16.mxu0 0
    %1878 = vmatmul.mubr.bf16.gmra.mrb[0].mxu0 %v1843
    %v1879 = vpop.f32.mrb[0].mxu0
    %v1880 = vadd.f32 0.0, %v1879
    %v1881 = vpop.f32.mrb[0].mxu0
    %v1882 = vpop.f32.mrb[0].mxu0
    %v1883 = vadd.f32 0.0, %v1882
    %v1884 = vpop.f32.mrb[0].mxu0
    %1885 = vdwg.mxu0
    %1886 = vrot.lane.b32.xlu0 %v304, 64
    %v1887 = vpop.permute.xlu0 %1886
    %v1890 = vsel %vm1111, %v1410, 0
    %1892 = vmatprep.subr.bf16.mxu0 0
    %1893 = vmatpush1.bf16.msra.mxu0 %v1887
    %1894 = vmatprep.subr.bf16.mxu0 0
    %1895 = vmatpush1.bf16.msra.mxu0 0
    %1896 = vmatprep.subr.bf16.mxu0 0
    %1897 = vmatpush1.bf16.msra.mxu0 0
    %1898 = vmatprep.subr.bf16.mxu0 0
    %1899 = vmatpush1.bf16.msra.mxu0 0
    %1900 = vmatprep.subr.bf16.mxu0 0
    %1901 = vmatpush1.bf16.msra.mxu0 0
    %1902 = vmatprep.subr.bf16.mxu0 0
    %1903 = vmatpush1.bf16.msra.mxu0 0
    %1904 = vmatprep.subr.bf16.mxu0 0
    %1905 = vmatpush1.bf16.msra.mxu0 0
    %1906 = vmatprep.subr.bf16.mxu0 0
    %1907 = vmatpush1.bf16.msra.mxu0 0
    %1908 = vmatprep.subr.bf16.mxu0 0
    %1909 = vmatpush1.bf16.msra.mxu0 0
    %1910 = vmatprep.subr.bf16.mxu0 0
    %1911 = vmatpush1.bf16.msra.mxu0 0
    %1912 = vmatprep.subr.bf16.mxu0 0
    %1913 = vmatpush1.bf16.msra.mxu0 0
    %1914 = vmatprep.subr.bf16.mxu0 0
    %1915 = vmatpush1.bf16.msra.mxu0 0
    %1916 = vmatprep.subr.bf16.mxu0 0
    %1917 = vmatpush1.bf16.msra.mxu0 0
    %1918 = vmatprep.subr.bf16.mxu0 0
    %1919 = vmatpush1.bf16.msra.mxu0 0
    %1920 = vmatprep.subr.bf16.mxu0 0
    %1921 = vmatpush1.bf16.msra.mxu0 0
    %1922 = vmatprep.subr.bf16.mxu0 0
    %1923 = vmatpush1.bf16.msra.mxu0 0
    %1924 = vmatprep.mubr.bf16.mxu0 0
    %1925 = vmatmul.mubr.bf16.gmra.mrb[0].mxu0 %v1890
    %v1926 = vpop.f32.mrb[0].mxu0
    %v1927 = vadd.f32 0.0, %v1926
    %v1928 = vpop.f32.mrb[0].mxu0
    %v1929 = vpop.f32.mrb[0].mxu0
    %v1930 = vadd.f32 0.0, %v1929
    %v1931 = vpop.f32.mrb[0].mxu0
    %1932 = vdwg.mxu0
    %1933 = vrot.lane.b32.xlu0 %v305, 64
    %v1934 = vpop.permute.xlu0 %1933
    %v1937 = vsel %vm1111, %v1411, 0
    %1939 = vmatprep.subr.bf16.mxu0 0
    %1940 = vmatpush1.bf16.msra.mxu0 %v1934
    %1941 = vmatprep.subr.bf16.mxu0 0
    %1942 = vmatpush1.bf16.msra.mxu0 0
    %1943 = vmatprep.subr.bf16.mxu0 0
    %1944 = vmatpush1.bf16.msra.mxu0 0
    %1945 = vmatprep.subr.bf16.mxu0 0
    %1946 = vmatpush1.bf16.msra.mxu0 0
    %1947 = vmatprep.subr.bf16.mxu0 0
    %1948 = vmatpush1.bf16.msra.mxu0 0
    %1949 = vmatprep.subr.bf16.mxu0 0
    %1950 = vmatpush1.bf16.msra.mxu0 0
    %1951 = vmatprep.subr.bf16.mxu0 0
    %1952 = vmatpush1.bf16.msra.mxu0 0
    %1953 = vmatprep.subr.bf16.mxu0 0
    %1954 = vmatpush1.bf16.msra.mxu0 0
    %1955 = vmatprep.subr.bf16.mxu0 0
    %1956 = vmatpush1.bf16.msra.mxu0 0
    %1957 = vmatprep.subr.bf16.mxu0 0
    %1958 = vmatpush1.bf16.msra.mxu0 0
    %1959 = vmatprep.subr.bf16.mxu0 0
    %1960 = vmatpush1.bf16.msra.mxu0 0
    %1961 = vmatprep.subr.bf16.mxu0 0
    %1962 = vmatpush1.bf16.msra.mxu0 0
    %1963 = vmatprep.subr.bf16.mxu0 0
    %1964 = vmatpush1.bf16.msra.mxu0 0
    %1965 = vmatprep.subr.bf16.mxu0 0
    %1966 = vmatpush1.bf16.msra.mxu0 0
    %1967 = vmatprep.subr.bf16.mxu0 0
    %1968 = vmatpush1.bf16.msra.mxu0 0
    %1969 = vmatprep.subr.bf16.mxu0 0
    %1970 = vmatpush1.bf16.msra.mxu0 0
    %1971 = vmatprep.mubr.bf16.mxu0 0
    %1972 = vmatmul.mubr.bf16.gmra.mrb[0].mxu0 %v1937
    %v1973 = vpop.f32.mrb[0].mxu0
    %v1974 = vadd.f32 0.0, %v1973
    %v1975 = vpop.f32.mrb[0].mxu0
    %v1976 = vpop.f32.mrb[0].mxu0
    %v1977 = vadd.f32 0.0, %v1976
    %v1978 = vpop.f32.mrb[0].mxu0
    %1979 = vdwg.mxu0
    %1980 = vrot.lane.b32.xlu0 %v306, 64
    %v1981 = vpop.permute.xlu0 %1980
    %v1984 = vsel %vm1111, %v1412, 0
    %1986 = vmatprep.subr.bf16.mxu0 0
    %1987 = vmatpush1.bf16.msra.mxu0 %v1981
    %1988 = vmatprep.subr.bf16.mxu0 0
    %1989 = vmatpush1.bf16.msra.mxu0 0
    %1990 = vmatprep.subr.bf16.mxu0 0
    %1991 = vmatpush1.bf16.msra.mxu0 0
    %1992 = vmatprep.subr.bf16.mxu0 0
    %1993 = vmatpush1.bf16.msra.mxu0 0
    %1994 = vmatprep.subr.bf16.mxu0 0
    %1995 = vmatpush1.bf16.msra.mxu0 0
    %1996 = vmatprep.subr.bf16.mxu0 0
    %1997 = vmatpush1.bf16.msra.mxu0 0
    %1998 = vmatprep.subr.bf16.mxu0 0
    %1999 = vmatpush1.bf16.msra.mxu0 0
    %2000 = vmatprep.subr.bf16.mxu0 0
    %2001 = vmatpush1.bf16.msra.mxu0 0
    %2002 = vmatprep.subr.bf16.mxu0 0
    %2003 = vmatpush1.bf16.msra.mxu0 0
    %2004 = vmatprep.subr.bf16.mxu0 0
    %2005 = vmatpush1.bf16.msra.mxu0 0
    %2006 = vmatprep.subr.bf16.mxu0 0
    %2007 = vmatpush1.bf16.msra.mxu0 0
    %2008 = vmatprep.subr.bf16.mxu0 0
    %2009 = vmatpush1.bf16.msra.mxu0 0
    %2010 = vmatprep.subr.bf16.mxu0 0
    %2011 = vmatpush1.bf16.msra.mxu0 0
    %2012 = vmatprep.subr.bf16.mxu0 0
    %2013 = vmatpush1.bf16.msra.mxu0 0
    %2014 = vmatprep.subr.bf16.mxu0 0
    %2015 = vmatpush1.bf16.msra.mxu0 0
    %2016 = vmatprep.subr.bf16.mxu0 0
    %2017 = vmatpush1.bf16.msra.mxu0 0
    %2018 = vmatprep.mubr.bf16.mxu0 0
    %2019 = vmatmul.mubr.bf16.gmra.mrb[0].mxu0 %v1984
    %v2020 = vpop.f32.mrb[0].mxu0
    %v2021 = vadd.f32 0.0, %v2020
    %v2022 = vpop.f32.mrb[0].mxu0
    %v2023 = vpop.f32.mrb[0].mxu0
    %v2024 = vadd.f32 0.0, %v2023
    %v2025 = vpop.f32.mrb[0].mxu0
    %2026 = vdwg.mxu0
    %2027 = vrot.lane.b32.xlu0 %v307, 64
    %v2028 = vpop.permute.xlu0 %2027
    %v2031 = vsel %vm1111, %v1413, 0
    %2033 = vmatprep.subr.bf16.mxu0 0
    %2034 = vmatpush1.bf16.msra.mxu0 %v2028
    %2035 = vmatprep.subr.bf16.mxu0 0
    %2036 = vmatpush1.bf16.msra.mxu0 0
    %2037 = vmatprep.subr.bf16.mxu0 0
    %2038 = vmatpush1.bf16.msra.mxu0 0
    %2039 = vmatprep.subr.bf16.mxu0 0
    %2040 = vmatpush1.bf16.msra.mxu0 0
    %2041 = vmatprep.subr.bf16.mxu0 0
    %2042 = vmatpush1.bf16.msra.mxu0 0
    %2043 = vmatprep.subr.bf16.mxu0 0
    %2044 = vmatpush1.bf16.msra.mxu0 0
    %2045 = vmatprep.subr.bf16.mxu0 0
    %2046 = vmatpush1.bf16.msra.mxu0 0
    %2047 = vmatprep.subr.bf16.mxu0 0
    %2048 = vmatpush1.bf16.msra.mxu0 0
    %2049 = vmatprep.subr.bf16.mxu0 0
    %2050 = vmatpush1.bf16.msra.mxu0 0
    %2051 = vmatprep.subr.bf16.mxu0 0
    %2052 = vmatpush1.bf16.msra.mxu0 0
    %2053 = vmatprep.subr.bf16.mxu0 0
    %2054 = vmatpush1.bf16.msra.mxu0 0
    %2055 = vmatprep.subr.bf16.mxu0 0
    %2056 = vmatpush1.bf16.msra.mxu0 0
    %2057 = vmatprep.subr.bf16.mxu0 0
    %2058 = vmatpush1.bf16.msra.mxu0 0
    %2059 = vmatprep.subr.bf16.mxu0 0
    %2060 = vmatpush1.bf16.msra.mxu0 0
    %2061 = vmatprep.subr.bf16.mxu0 0
    %2062 = vmatpush1.bf16.msra.mxu0 0
    %2063 = vmatprep.subr.bf16.mxu0 0
    %2064 = vmatpush1.bf16.msra.mxu0 0
    %2065 = vmatprep.mubr.bf16.mxu0 0
    %2066 = vmatmul.mubr.bf16.gmra.mrb[0].mxu0 %v2031
    %v2067 = vpop.f32.mrb[0].mxu0
    %v2068 = vadd.f32 0.0, %v2067
    %v2069 = vpop.f32.mrb[0].mxu0
    %v2070 = vpop.f32.mrb[0].mxu0
    %v2071 = vadd.f32 0.0, %v2070
    %v2072 = vpop.f32.mrb[0].mxu0
    %2073 = vdwg.mxu0
    %2074 = vrot.lane.b32.xlu0 %v308, 64
    %v2075 = vpop.permute.xlu0 %2074
    %v2078 = vsel %vm1111, %v1414, 0
    %2080 = vmatprep.subr.bf16.mxu0 0
    %2081 = vmatpush1.bf16.msra.mxu0 %v2075
    %2082 = vmatprep.subr.bf16.mxu0 0
    %2083 = vmatpush1.bf16.msra.mxu0 0
    %2084 = vmatprep.subr.bf16.mxu0 0
    %2085 = vmatpush1.bf16.msra.mxu0 0
    %2086 = vmatprep.subr.bf16.mxu0 0
    %2087 = vmatpush1.bf16.msra.mxu0 0
    %2088 = vmatprep.subr.bf16.mxu0 0
    %2089 = vmatpush1.bf16.msra.mxu0 0
    %2090 = vmatprep.subr.bf16.mxu0 0
    %2091 = vmatpush1.bf16.msra.mxu0 0
    %2092 = vmatprep.subr.bf16.mxu0 0
    %2093 = vmatpush1.bf16.msra.mxu0 0
    %2094 = vmatprep.subr.bf16.mxu0 0
    %2095 = vmatpush1.bf16.msra.mxu0 0
    %2096 = vmatprep.subr.bf16.mxu0 0
    %2097 = vmatpush1.bf16.msra.mxu0 0
    %2098 = vmatprep.subr.bf16.mxu0 0
    %2099 = vmatpush1.bf16.msra.mxu0 0
    %2100 = vmatprep.subr.bf16.mxu0 0
    %2101 = vmatpush1.bf16.msra.mxu0 0
    %2102 = vmatprep.subr.bf16.mxu0 0
    %2103 = vmatpush1.bf16.msra.mxu0 0
    %2104 = vmatprep.subr.bf16.mxu0 0
    %2105 = vmatpush1.bf16.msra.mxu0 0
    %2106 = vmatprep.subr.bf16.mxu0 0
    %2107 = vmatpush1.bf16.msra.mxu0 0
    %2108 = vmatprep.subr.bf16.mxu0 0
    %2109 = vmatpush1.bf16.msra.mxu0 0
    %2110 = vmatprep.subr.bf16.mxu0 0
    %2111 = vmatpush1.bf16.msra.mxu0 0
    %2112 = vmatprep.mubr.bf16.mxu0 0
    %2113 = vmatmul.mubr.bf16.gmra.mrb[0].mxu0 %v2078
    %v2114 = vpop.f32.mrb[0].mxu0
    %v2115 = vadd.f32 0.0, %v2114
    %v2116 = vpop.f32.mrb[0].mxu0
    %v2117 = vpop.f32.mrb[0].mxu0
    %v2118 = vadd.f32 0.0, %v2117
    %v2119 = vpop.f32.mrb[0].mxu0
    %2120 = vdwg.mxu0
    %2121 = vrot.lane.b32.xlu0 %v309, 64
    %v2122 = vpop.permute.xlu0 %2121
    %v2125 = vsel %vm1111, %v1415, 0
    %2127 = vmatprep.subr.bf16.mxu0 0
    %2128 = vmatpush1.bf16.msra.mxu0 %v2122
    %2129 = vmatprep.subr.bf16.mxu0 0
    %2130 = vmatpush1.bf16.msra.mxu0 0
    %2131 = vmatprep.subr.bf16.mxu0 0
    %2132 = vmatpush1.bf16.msra.mxu0 0
    %2133 = vmatprep.subr.bf16.mxu0 0
    %2134 = vmatpush1.bf16.msra.mxu0 0
    %2135 = vmatprep.subr.bf16.mxu0 0
    %2136 = vmatpush1.bf16.msra.mxu0 0
    %2137 = vmatprep.subr.bf16.mxu0 0
    %2138 = vmatpush1.bf16.msra.mxu0 0
    %2139 = vmatprep.subr.bf16.mxu0 0
    %2140 = vmatpush1.bf16.msra.mxu0 0
    %2141 = vmatprep.subr.bf16.mxu0 0
    %2142 = vmatpush1.bf16.msra.mxu0 0
    %2143 = vmatprep.subr.bf16.mxu0 0
    %2144 = vmatpush1.bf16.msra.mxu0 0
    %2145 = vmatprep.subr.bf16.mxu0 0
    %2146 = vmatpush1.bf16.msra.mxu0 0
    %2147 = vmatprep.subr.bf16.mxu0 0
    %2148 = vmatpush1.bf16.msra.mxu0 0
    %2149 = vmatprep.subr.bf16.mxu0 0
    %2150 = vmatpush1.bf16.msra.mxu0 0
    %2151 = vmatprep.subr.bf16.mxu0 0
    %2152 = vmatpush1.bf16.msra.mxu0 0
    %2153 = vmatprep.subr.bf16.mxu0 0
    %2154 = vmatpush1.bf16.msra.mxu0 0
    %2155 = vmatprep.subr.bf16.mxu0 0
    %2156 = vmatpush1.bf16.msra.mxu0 0
    %2157 = vmatprep.subr.bf16.mxu0 0
    %2158 = vmatpush1.bf16.msra.mxu0 0
    %2159 = vmatprep.mubr.bf16.mxu0 0
    %2160 = vmatmul.mubr.bf16.gmra.mrb[0].mxu0 %v2125
    %v2161 = vpop.f32.mrb[0].mxu0
    %v2162 = vadd.f32 0.0, %v2161
    %v2163 = vpop.f32.mrb[0].mxu0
    %v2164 = vpop.f32.mrb[0].mxu0
    %v2165 = vadd.f32 0.0, %v2164
    %v2166 = vpop.f32.mrb[0].mxu0
    %2167 = vdwg.mxu0
    %v2168 = vrcp.pop %v1306
    %v2169 = vrcp.pop %v1309
    %v2170 = vrcp.pop %v1312
    %v2171 = vrcp.pop %v1315
    %v2172 = vrcp.pop %v1318
    %v2173 = vrcp.pop %v1321
    %v2174 = vrcp.pop %v1324
    %v2175 = vrcp.pop %v1327
    %v2176 = vrcp.pop %v1330
    %v2177 = vrcp.pop %v1333
    %v2178 = vrcp.pop %v1336
    %v2179 = vrcp.pop %v1339
    %v2180 = vrcp.pop %v1342
    %v2181 = vrcp.pop %v1345
    %v2182 = vrcp.pop %v1348
    %v2183 = vrcp.pop %v1351
    %v2184 = vrcp.pop %v1354
    %v2185 = vrcp.pop %v1357
    %v2186 = vrcp.pop %v1360
    %v2187 = vrcp.pop %v1363
    %v2188 = vrcp.pop %v1366
    %v2189 = vrcp.pop %v1369
    %v2190 = vrcp.pop %v1372
    %v2191 = vrcp.pop %v1375
    %v2192 = vrcp.pop %v1378
    %v2193 = vrcp.pop %v1381
    %v2194 = vrcp.pop %v1384
    %v2195 = vrcp.pop %v1387
    %v2196 = vrcp.pop %v1390
    %v2197 = vrcp.pop %v1393
    %v2198 = vrcp.pop %v1396
    %v2199 = vrcp.pop %v1399
    %v2200 = vmul.f32 %v1457, %v2168
    %v2201 = vmul.f32 %v1460, %v2169
    %v2202 = vmul.f32 %v1504, %v2170
    %v2203 = vmul.f32 %v1507, %v2171
    %v2204 = vmul.f32 %v1551, %v2172
    %v2205 = vmul.f32 %v1554, %v2173
    %v2206 = vmul.f32 %v1598, %v2174
    %v2207 = vmul.f32 %v1601, %v2175
    %v2208 = vmul.f32 %v1645, %v2176
    %v2209 = vmul.f32 %v1648, %v2177
    %v2210 = vmul.f32 %v1692, %v2178
    %v2211 = vmul.f32 %v1695, %v2179
    %v2212 = vmul.f32 %v1739, %v2180
    %v2213 = vmul.f32 %v1742, %v2181
    %v2214 = vmul.f32 %v1786, %v2182
    %v2215 = vmul.f32 %v1789, %v2183
    %v2216 = vmul.f32 %v1833, %v2184
    %v2217 = vmul.f32 %v1836, %v2185
    %v2218 = vmul.f32 %v1880, %v2186
    %v2219 = vmul.f32 %v1883, %v2187
    %v2220 = vmul.f32 %v1927, %v2188
    %v2221 = vmul.f32 %v1930, %v2189
    %v2222 = vmul.f32 %v1974, %v2190
    %v2223 = vmul.f32 %v1977, %v2191
    %v2224 = vmul.f32 %v2021, %v2192
    %v2225 = vmul.f32 %v2024, %v2193
    %v2226 = vmul.f32 %v2068, %v2194
    %v2227 = vmul.f32 %v2071, %v2195
    %v2228 = vmul.f32 %v2115, %v2196
    %v2229 = vmul.f32 %v2118, %v2197
    %v2230 = vmul.f32 %v2162, %v2198
    %v2231 = vmul.f32 %v2165, %v2199
    %2236 = vrot.lane.b32.xlu0 %v2202, 4
    %v2237 = vpop.permute.xlu0 %2236
    %2238 = vrot.lane.b32.xlu0 %v2203, 4
    %v2239 = vpop.permute.xlu0 %2238
    %2240 = vrot.lane.b32.xlu0 %v2218, 4
    %v2241 = vpop.permute.xlu0 %2240
    %2242 = vrot.lane.b32.xlu0 %v2219, 4
    %v2243 = vpop.permute.xlu0 %2242
    %2252 = vrot.lane.b32.xlu0 %v2204, 8
    %v2253 = vpop.permute.xlu0 %2252
    %2254 = vrot.lane.b32.xlu0 %v2205, 8
    %v2255 = vpop.permute.xlu0 %2254
    %2256 = vrot.lane.b32.xlu0 %v2220, 8
    %v2257 = vpop.permute.xlu0 %2256
    %2258 = vrot.lane.b32.xlu0 %v2221, 8
    %v2259 = vpop.permute.xlu0 %2258
    %2268 = vrot.lane.b32.xlu0 %v2206, 12
    %v2269 = vpop.permute.xlu0 %2268
    %2270 = vrot.lane.b32.xlu0 %v2207, 12
    %v2271 = vpop.permute.xlu0 %2270
    %2272 = vrot.lane.b32.xlu0 %v2222, 12
    %v2273 = vpop.permute.xlu0 %2272
    %2274 = vrot.lane.b32.xlu0 %v2223, 12
    %v2275 = vpop.permute.xlu0 %2274
    %2284 = vrot.lane.b32.xlu0 %v2208, 16
    %v2285 = vpop.permute.xlu0 %2284
    %2286 = vrot.lane.b32.xlu0 %v2209, 16
    %v2287 = vpop.permute.xlu0 %2286
    %2288 = vrot.lane.b32.xlu0 %v2224, 16
    %v2289 = vpop.permute.xlu0 %2288
    %2290 = vrot.lane.b32.xlu0 %v2225, 16
    %v2291 = vpop.permute.xlu0 %2290
    %2300 = vrot.lane.b32.xlu0 %v2210, 20
    %v2301 = vpop.permute.xlu0 %2300
    %2302 = vrot.lane.b32.xlu0 %v2211, 20
    %v2303 = vpop.permute.xlu0 %2302
    %2304 = vrot.lane.b32.xlu0 %v2226, 20
    %v2305 = vpop.permute.xlu0 %2304
    %2306 = vrot.lane.b32.xlu0 %v2227, 20
    %v2307 = vpop.permute.xlu0 %2306
    %2316 = vrot.lane.b32.xlu0 %v2212, 24
    %v2317 = vpop.permute.xlu0 %2316
    %2318 = vrot.lane.b32.xlu0 %v2213, 24
    %v2319 = vpop.permute.xlu0 %2318
    %2320 = vrot.lane.b32.xlu0 %v2228, 24
    %v2321 = vpop.permute.xlu0 %2320
    %2322 = vrot.lane.b32.xlu0 %v2229, 24
    %v2323 = vpop.permute.xlu0 %2322
    %2332 = vrot.lane.b32.xlu0 %v2214, 28
    %v2333 = vpop.permute.xlu0 %2332
    %2334 = vrot.lane.b32.xlu0 %v2215, 28
    %v2335 = vpop.permute.xlu0 %2334
    %2336 = vrot.lane.b32.xlu0 %v2230, 28
    %v2337 = vpop.permute.xlu0 %2336
    %2338 = vrot.lane.b32.xlu0 %v2231, 28
    %v2339 = vpop.permute.xlu0 %2338
    %v2344 = vsel %vm313, %v2200, %v2237
    %v2345 = vsel %vm313, %v2201, %v2239
    %v2346 = vsel %vm313, %v2216, %v2241
    %v2347 = vsel %vm313, %v2217, %v2243
    %vm2348 = vcmask 64512
    %v2349 = vsel %vm2348, %v2344, %v2253
    %v2350 = vsel %vm2348, %v2345, %v2255
    %v2351 = vsel %vm2348, %v2346, %v2257
    %v2352 = vsel %vm2348, %v2347, %v2259
    %vm2353 = vcmask 97280
    %v2354 = vsel %vm2353, %v2349, %v2269
    %v2355 = vsel %vm2353, %v2350, %v2271
    %v2356 = vsel %vm2353, %v2351, %v2273
    %v2357 = vsel %vm2353, %v2352, %v2275
    %v2358 = vsel %vm1111, %v2354, %v2285
    %v2359 = vsel %vm1111, %v2355, %v2287
    %v2360 = vsel %vm1111, %v2356, %v2289
    %v2361 = vsel %vm1111, %v2357, %v2291
    %vm2362 = vcmask 162816
    %v2363 = vsel %vm2362, %v2358, %v2301
    %v2364 = vsel %vm2362, %v2359, %v2303
    %v2365 = vsel %vm2362, %v2360, %v2305
    %v2366 = vsel %vm2362, %v2361, %v2307
    %vm2367 = vcmask 195584
    %v2368 = vsel %vm2367, %v2363, %v2317
    %v2369 = vsel %vm2367, %v2364, %v2319
    %v2370 = vsel %vm2367, %v2365, %v2321
    %v2371 = vsel %vm2367, %v2366, %v2323
    %vm2372 = vcmask 228352
    %v2373 = vsel %vm2372, %v2368, %v2333
    %v2374 = vsel %vm2372, %v2369, %v2335
    %v2375 = vsel %vm2372, %v2370, %v2337
    %v2376 = vsel %vm2372, %v2371, %v2339
    %v2377 = vpack.c.bf16 %v2374, %v2373
    %v2378 = vpack.c.bf16 %v2376, %v2375
    %v2379 = vld [vmem:[%s5] sm:$0xf]
    %v2380 = vld [vmem:[%s5 + $0x4] sm:$0xf]
    %v2381 = vld [vmem:[%s5 + $0x8] sm:$0xf]
    %v2382 = vld [vmem:[%s5 + $0xc] sm:$0xf]
    %v2383 = vld [vmem:[%s6] sm:$0x1]
    %v2385 = vlaneseq
    %v2386 = vshrl.u32 %v2385, 7
    %v2387 = vsub.s32 0, %v2386
    %v2388 = vrot.slane %v2383, %v2387
    %v2394 = vunpack.c.l.b16 %v2379
    %v2395 = vunpack.c.l.b16 %v2380
    %v2396 = vunpack.c.l.b16 %v2381
    %v2397 = vunpack.c.l.b16 %v2382
    %v2398 = vpack.c.b16 %v2395, %v2394
    %v2399 = vpack.c.b16 %v2397, %v2396
    %v2403 = vsel %vm52, %v2377, 0
    %v2406 = vsel %vm52, %v2378, 0
    %2408 = vmatprep.subr.bf16.mxu0 0
    %2409 = vmatpush1.bf16.msra.mxu0 %v2398
    %2410 = vmatprep.subr.bf16.mxu0 0
    %2411 = vmatpush1.bf16.msra.mxu0 %v2399
    %2412 = vmatprep.subr.bf16.mxu0 0
    %2413 = vmatpush1.bf16.msra.mxu0 0
    %2414 = vmatprep.subr.bf16.mxu0 0
    %2415 = vmatpush1.bf16.msra.mxu0 0
    %2416 = vmatprep.subr.bf16.mxu0 0
    %2417 = vmatpush1.bf16.msra.mxu0 0
    %2418 = vmatprep.subr.bf16.mxu0 0
    %2419 = vmatpush1.bf16.msra.mxu0 0
    %2420 = vmatprep.subr.bf16.mxu0 0
    %2421 = vmatpush1.bf16.msra.mxu0 0
    %2422 = vmatprep.subr.bf16.mxu0 0
    %2423 = vmatpush1.bf16.msra.mxu0 0
    %2424 = vmatprep.subr.bf16.mxu0 0
    %2425 = vmatpush1.bf16.msra.mxu0 0
    %2426 = vmatprep.subr.bf16.mxu0 0
    %2427 = vmatpush1.bf16.msra.mxu0 0
    %2428 = vmatprep.subr.bf16.mxu0 0
    %2429 = vmatpush1.bf16.msra.mxu0 0
    %2430 = vmatprep.subr.bf16.mxu0 0
    %2431 = vmatpush1.bf16.msra.mxu0 0
    %2432 = vmatprep.subr.bf16.mxu0 0
    %2433 = vmatpush1.bf16.msra.mxu0 0
    %2434 = vmatprep.subr.bf16.mxu0 0
    %2435 = vmatpush1.bf16.msra.mxu0 0
    %2436 = vmatprep.subr.bf16.mxu0 0
    %2437 = vmatpush1.bf16.msra.mxu0 0
    %2438 = vmatprep.subr.bf16.mxu0 0
    %2439 = vmatpush1.bf16.msra.mxu0 0
    %2440 = vmatprep.mubr.bf16.mxu0 0
    %2441 = vmatmul.mubr.bf16.gmra.mrb[0].mxu0 %v2403
    %v2442 = vpop.f32.mrb[0].mxu0
    %v2443 = vadd.f32 %v2388, %v2442
    %v2444 = vpop.f32.mrb[0].mxu0
    %v2445 = vpop.f32.mrb[0].mxu0
    %v2446 = vadd.f32 %v2388, %v2445
    %v2447 = vpop.f32.mrb[0].mxu0
    %2448 = vmatprep.mubr.bf16.mxu0 0
    %2449 = vmatmul.mubr.bf16.gmra.mrb[0].mxu0 %v2406
    %v2450 = vpop.f32.mrb[0].mxu0
    %v2451 = vadd.f32 %v2388, %v2450
    %v2452 = vpop.f32.mrb[0].mxu0
    %v2453 = vpop.f32.mrb[0].mxu0
    %v2454 = vadd.f32 %v2388, %v2453
    %v2455 = vpop.f32.mrb[0].mxu0
    %2456 = vdwg.mxu0
    %v2457 = vadd.f32 %v46, %v2443
    %v2458 = vadd.f32 %v47, %v2446
    %v2459 = vadd.f32 %v48, %v2451
    %v2460 = vadd.f32 %v49, %v2454
    %v2461 = vld [vmem:[%s7] sm:$0x1]
    %v2462 = vld [vmem:[%s8] sm:$0x1]
    %v2463 = vsel %vm52, %v2457, 0.0
    %2464 = vadd.xlane.f32.xlu0 %v2463
    %v2465 = vpop.xlane.xlu0 %2464
    %v2466 = vsel %vm52, %v2458, 0.0
    %2467 = vadd.xlane.f32.xlu0 %v2466
    %v2468 = vpop.xlane.xlu0 %2467
    %v2469 = vsel %vm52, %v2459, 0.0
    %2470 = vadd.xlane.f32.xlu0 %v2469
    %v2471 = vpop.xlane.xlu0 %2470
    %v2472 = vsel %vm52, %v2460, 0.0
    %2473 = vadd.xlane.f32.xlu0 %v2472
    %v2474 = vpop.xlane.xlu0 %2473
    %v2475 = vmul.f32 %v2465, %v65
    %v2476 = vmul.f32 %v2468, %v65
    %v2477 = vmul.f32 %v2471, %v65
    %v2478 = vmul.f32 %v2474, %v65
    %v2479 = vsub.f32 %v2457, %v2475
    %v2480 = vsub.f32 %v2458, %v2476
    %v2481 = vsub.f32 %v2459, %v2477
    %v2482 = vsub.f32 %v2460, %v2478
    %v2483 = vmul.f32 %v2479, %v2479
    %v2484 = vmul.f32 %v2480, %v2480
    %v2485 = vmul.f32 %v2481, %v2481
    %v2486 = vmul.f32 %v2482, %v2482
    %v2487 = vsel %vm52, %v2483, 0.0
    %2488 = vadd.xlane.f32.xlu0 %v2487
    %v2489 = vpop.xlane.xlu0 %2488
    %v2490 = vsel %vm52, %v2484, 0.0
    %2491 = vadd.xlane.f32.xlu0 %v2490
    %v2492 = vpop.xlane.xlu0 %2491
    %v2493 = vsel %vm52, %v2485, 0.0
    %2494 = vadd.xlane.f32.xlu0 %v2493
    %v2495 = vpop.xlane.xlu0 %2494
    %v2496 = vsel %vm52, %v2486, 0.0
    %2497 = vadd.xlane.f32.xlu0 %v2496
    %v2498 = vpop.xlane.xlu0 %2497
    %v2499 = vmul.f32 %v2489, %v65
    %v2500 = vmul.f32 %v2492, %v65
    %v2501 = vmul.f32 %v2495, %v65
    %v2502 = vmul.f32 %v2498, %v65
    %v2503 = vadd.f32 %v2499, 1e-05
    %v2504 = vadd.f32 %v2500, 1e-05
    %v2505 = vadd.f32 %v2501, 1e-05
    %v2506 = vadd.f32 %v2502, 1e-05
    %v2507 = vrsqrt.pop %v2503
    %v2508 = vrsqrt.pop %v2504
    %v2509 = vrsqrt.pop %v2505
    %v2510 = vrsqrt.pop %v2506
    %v2511 = vmul.f32 %v2479, %v2507
    %v2512 = vmul.f32 %v2480, %v2508
    %v2513 = vmul.f32 %v2481, %v2509
    %v2514 = vmul.f32 %v2482, %v2510
    %v2516 = vlaneseq
    %v2517 = vshrl.u32 %v2516, 7
    %v2518 = vsub.s32 0, %v2517
    %v2519 = vrot.slane %v2461, %v2518
    %v2521 = vmul.f32 %v2511, %v2519
    %v2522 = vmul.f32 %v2512, %v2519
    %v2523 = vmul.f32 %v2513, %v2519
    %v2524 = vmul.f32 %v2514, %v2519
    %v2526 = vlaneseq
    %v2527 = vshrl.u32 %v2526, 7
    %v2528 = vsub.s32 0, %v2527
    %v2529 = vrot.slane %v2462, %v2528
    %v2531 = vadd.f32 %v2521, %v2529
    %v2532 = vadd.f32 %v2522, %v2529
    %v2533 = vadd.f32 %v2523, %v2529
    %v2534 = vadd.f32 %v2524, %v2529
    %v2535 = vpack.c.bf16 %v2532, %v2531
    %v2536 = vpack.c.bf16 %v2534, %v2533
    %v2537 = vld [vmem:[%s9] sm:$0xf]
    %v2538 = vld [vmem:[%s9 + $0x4] sm:$0xf]
    %v2539 = vld [vmem:[%s9 + $0x8] sm:$0xf]
    %v2540 = vld [vmem:[%s9 + $0xc] sm:$0xf]
    %v2541 = vld [vmem:[%s10] sm:$0x1]
    %v2543 = vlaneseq
    %v2544 = vshrl.u32 %v2543, 7
    %v2545 = vsub.s32 0, %v2544
    %v2546 = vrot.slane %v2541, %v2545
    %v2552 = vunpack.c.l.b16 %v2537
    %v2553 = vunpack.c.l.b16 %v2538
    %v2554 = vunpack.c.l.b16 %v2539
    %v2555 = vunpack.c.l.b16 %v2540
    %v2556 = vpack.c.b16 %v2553, %v2552
    %v2557 = vpack.c.b16 %v2555, %v2554
    %v2561 = vsel %vm52, %v2535, 0
    %v2564 = vsel %vm52, %v2536, 0
    %2566 = vmatprep.subr.bf16.mxu0 0
    %2567 = vmatpush1.bf16.msra.mxu0 %v2556
    %2568 = vmatprep.subr.bf16.mxu0 0
    %2569 = vmatpush1.bf16.msra.mxu0 %v2557
    %2570 = vmatprep.subr.bf16.mxu0 0
    %2571 = vmatpush1.bf16.msra.mxu0 0
    %2572 = vmatprep.subr.bf16.mxu0 0
    %2573 = vmatpush1.bf16.msra.mxu0 0
    %2574 = vmatprep.subr.bf16.mxu0 0
    %2575 = vmatpush1.bf16.msra.mxu0 0
    %2576 = vmatprep.subr.bf16.mxu0 0
    %2577 = vmatpush1.bf16.msra.mxu0 0
    %2578 = vmatprep.subr.bf16.mxu0 0
    %2579 = vmatpush1.bf16.msra.mxu0 0
    %2580 = vmatprep.subr.bf16.mxu0 0
    %2581 = vmatpush1.bf16.msra.mxu0 0
    %2582 = vmatprep.subr.bf16.mxu0 0
    %2583 = vmatpush1.bf16.msra.mxu0 0
    %2584 = vmatprep.subr.bf16.mxu0 0
    %2585 = vmatpush1.bf16.msra.mxu0 0
    %2586 = vmatprep.subr.bf16.mxu0 0
    %2587 = vmatpush1.bf16.msra.mxu0 0
    %2588 = vmatprep.subr.bf16.mxu0 0
    %2589 = vmatpush1.bf16.msra.mxu0 0
    %2590 = vmatprep.subr.bf16.mxu0 0
    %2591 = vmatpush1.bf16.msra.mxu0 0
    %2592 = vmatprep.subr.bf16.mxu0 0
    %2593 = vmatpush1.bf16.msra.mxu0 0
    %2594 = vmatprep.subr.bf16.mxu0 0
    %2595 = vmatpush1.bf16.msra.mxu0 0
    %2596 = vmatprep.subr.bf16.mxu0 0
    %2597 = vmatpush1.bf16.msra.mxu0 0
    %2598 = vmatprep.mubr.bf16.mxu0 0
    %2599 = vmatmul.mubr.bf16.gmra.mrb[0].mxu0 %v2561
    %v2600 = vpop.f32.mrb[0].mxu0
    %v2601 = vadd.f32 %v2546, %v2600
    %v2602 = vpop.f32.mrb[0].mxu0
    %v2603 = vpop.f32.mrb[0].mxu0
    %v2604 = vadd.f32 %v2546, %v2603
    %v2605 = vpop.f32.mrb[0].mxu0
    %2606 = vmatprep.mubr.bf16.mxu0 0
    %2607 = vmatmul.mubr.bf16.gmra.mrb[0].mxu0 %v2564
    %v2608 = vpop.f32.mrb[0].mxu0
    %v2609 = vadd.f32 %v2546, %v2608
    %v2610 = vpop.f32.mrb[0].mxu0
    %v2611 = vpop.f32.mrb[0].mxu0
    %v2612 = vadd.f32 %v2546, %v2611
    %v2613 = vpop.f32.mrb[0].mxu0
    %2614 = vdwg.mxu0
    %v2615 = vmul.f32 %v2601, 0.5
    %v2616 = vmul.f32 %v2604, 0.5
    %v2617 = vmul.f32 %v2609, 0.5
    %v2618 = vmul.f32 %v2612, 0.5
    %v2619 = vmul.f32 %v2601, 0.044715
    %v2620 = vmul.f32 %v2604, 0.044715
    %v2621 = vmul.f32 %v2609, 0.044715
    %v2622 = vmul.f32 %v2612, 0.044715
    %v2623 = vmul.f32 %v2619, %v2601
    %v2624 = vmul.f32 %v2620, %v2604
    %v2625 = vmul.f32 %v2621, %v2609
    %v2626 = vmul.f32 %v2622, %v2612
    %v2627 = vmul.f32 %v2623, %v2601
    %v2628 = vmul.f32 %v2624, %v2604
    %v2629 = vmul.f32 %v2625, %v2609
    %v2630 = vmul.f32 %v2626, %v2612
    %v2631 = vadd.f32 %v2601, %v2627
    %v2632 = vadd.f32 %v2604, %v2628
    %v2633 = vadd.f32 %v2609, %v2629
    %v2634 = vadd.f32 %v2612, %v2630
    %v2635 = vmul.f32 %v2631, 0.7978846
    %v2636 = vmul.f32 %v2632, 0.7978846
    %v2637 = vmul.f32 %v2633, 0.7978846
    %v2638 = vmul.f32 %v2634, 0.7978846
    %v2639 = vtanh.pop %v2635
    %v2640 = vtanh.pop %v2636
    %v2641 = vtanh.pop %v2637
    %v2642 = vtanh.pop %v2638
    %v2643 = vadd.f32 %v2639, 1.0
    %v2644 = vadd.f32 %v2640, 1.0
    %v2645 = vadd.f32 %v2641, 1.0
    %v2646 = vadd.f32 %v2642, 1.0
    %v2647 = vmul.f32 %v2615, %v2643
    %v2648 = vmul.f32 %v2616, %v2644
    %v2649 = vmul.f32 %v2617, %v2645
    %v2650 = vmul.f32 %v2618, %v2646
    %v2651 = vpack.c.bf16 %v2648, %v2647
    %v2652 = vpack.c.bf16 %v2650, %v2649
    %v2653 = vld [vmem:[%s11] sm:$0xf]
    %v2654 = vld [vmem:[%s11 + $0x4] sm:$0xf]
    %v2655 = vld [vmem:[%s11 + $0x8] sm:$0xf]
    %v2656 = vld [vmem:[%s11 + $0xc] sm:$0xf]
    %v2657 = vld [vmem:[%s11 + $0x10] sm:$0xf]
    %v2658 = vld [vmem:[%s11 + $0x14] sm:$0xf]
    %v2659 = vld [vmem:[%s11 + $0x18] sm:$0xf]
    %v2660 = vld [vmem:[%s11 + $0x1c] sm:$0xf]
    %v2661 = vld [vmem:[%s11 + $0x20] sm:$0xf]
    %v2662 = vld [vmem:[%s11 + $0x24] sm:$0xf]
    %v2663 = vld [vmem:[%s11 + $0x28] sm:$0xf]
    %v2664 = vld [vmem:[%s11 + $0x2c] sm:$0xf]
    %v2665 = vld [vmem:[%s11 + $0x30] sm:$0xf]
    %v2666 = vld [vmem:[%s11 + $0x34] sm:$0xf]
    %v2667 = vld [vmem:[%s11 + $0x38] sm:$0xf]
    %v2668 = vld [vmem:[%s11 + $0x3c] sm:$0xf]
    %v2669 = vld [vmem:[%s12] sm:$0x1]
    %v2671 = vlaneseq
    %v2672 = vshrl.u32 %v2671, 7
    %v2673 = vsub.s32 0, %v2672
    %v2674 = vrot.slane %v2669, %v2673
    %v2692 = vunpack.c.l.b16 %v2653
    %v2693 = vunpack.c.l.b16 %v2654
    %v2694 = vunpack.c.l.b16 %v2655
    %v2695 = vunpack.c.l.b16 %v2656
    %v2696 = vunpack.c.l.b16 %v2657
    %v2697 = vunpack.c.l.b16 %v2658
    %v2698 = vunpack.c.l.b16 %v2659
    %v2699 = vunpack.c.l.b16 %v2660
    %v2700 = vunpack.c.l.b16 %v2661
    %v2701 = vunpack.c.l.b16 %v2662
    %v2702 = vunpack.c.l.b16 %v2663
    %v2703 = vunpack.c.l.b16 %v2664
    %v2704 = vunpack.c.l.b16 %v2665
    %v2705 = vunpack.c.l.b16 %v2666
    %v2706 = vunpack.c.l.b16 %v2667
    %v2707 = vunpack.c.l.b16 %v2668
    %v2708 = vpack.c.b16 %v2693, %v2692
    %v2709 = vpack.c.b16 %v2695, %v2694
    %v2710 = vpack.c.b16 %v2697, %v2696
    %v2711 = vpack.c.b16 %v2699, %v2698
    %v2712 = vpack.c.b16 %v2701, %v2700
    %v2713 = vpack.c.b16 %v2703, %v2702
    %v2714 = vpack.c.b16 %v2705, %v2704
    %v2715 = vpack.c.b16 %v2707, %v2706
    %2724 = vmatprep.subr.bf16.mxu0 0
    %2725 = vmatpush1.bf16.msra.mxu0 %v2708
    %2726 = vmatprep.subr.bf16.mxu0 0
    %2727 = vmatpush1.bf16.msra.mxu0 %v2709
    %2728 = vmatprep.subr.bf16.mxu0 0
    %2729 = vmatpush1.bf16.msra.mxu0 %v2710
    %2730 = vmatprep.subr.bf16.mxu0 0
    %2731 = vmatpush1.bf16.msra.mxu0 %v2711
    %2732 = vmatprep.subr.bf16.mxu0 0
    %2733 = vmatpush1.bf16.msra.mxu0 %v2712
    %2734 = vmatprep.subr.bf16.mxu0 0
    %2735 = vmatpush1.bf16.msra.mxu0 %v2713
    %2736 = vmatprep.subr.bf16.mxu0 0
    %2737 = vmatpush1.bf16.msra.mxu0 %v2714
    %2738 = vmatprep.subr.bf16.mxu0 0
    %2739 = vmatpush1.bf16.msra.mxu0 %v2715
    %2740 = vmatprep.subr.bf16.mxu0 0
    %2741 = vmatpush1.bf16.msra.mxu0 0
    %2742 = vmatprep.subr.bf16.mxu0 0
    %2743 = vmatpush1.bf16.msra.mxu0 0
    %2744 = vmatprep.subr.bf16.mxu0 0
    %2745 = vmatpush1.bf16.msra.mxu0 0
    %2746 = vmatprep.subr.bf16.mxu0 0
    %2747 = vmatpush1.bf16.msra.mxu0 0
    %2748 = vmatprep.subr.bf16.mxu0 0
    %2749 = vmatpush1.bf16.msra.mxu0 0
    %2750 = vmatprep.subr.bf16.mxu0 0
    %2751 = vmatpush1.bf16.msra.mxu0 0
    %2752 = vmatprep.subr.bf16.mxu0 0
    %2753 = vmatpush1.bf16.msra.mxu0 0
    %2754 = vmatprep.subr.bf16.mxu0 0
    %2755 = vmatpush1.bf16.msra.mxu0 0
    %2756 = vmatprep.mubr.bf16.mxu0 0
    %2757 = vmatmul.mubr.bf16.gmra.mrb[0].mxu0 %v2651
    %v2758 = vpop.f32.mrb[0].mxu0
    %v2759 = vadd.f32 %v2674, %v2758
    %v2760 = vpop.f32.mrb[0].mxu0
    %v2761 = vpop.f32.mrb[0].mxu0
    %v2762 = vadd.f32 %v2674, %v2761
    %v2763 = vpop.f32.mrb[0].mxu0
    %2764 = vmatprep.mubr.bf16.mxu0 0
    %2765 = vmatmul.mubr.bf16.gmra.mrb[0].mxu0 %v2652
    %v2766 = vpop.f32.mrb[0].mxu0
    %v2767 = vadd.f32 %v2674, %v2766
    %v2768 = vpop.f32.mrb[0].mxu0
    %v2769 = vpop.f32.mrb[0].mxu0
    %v2770 = vadd.f32 %v2674, %v2769
    %v2771 = vpop.f32.mrb[0].mxu0
    %2772 = vdwg.mxu0
    %v2773 = vadd.f32 %v2457, %v2759
    %v2774 = vadd.f32 %v2458, %v2762
    %v2775 = vadd.f32 %v2459, %v2767
    %v2776 = vadd.f32 %v2460, %v2770
    %2777 = vst.msk [vmem:[#allocation2] sm:$0xff] %vm52, %v2773
    %2778 = vst.msk [vmem:[#allocation2 + $0x8] sm:$0xff] %vm52, %v2774
    %2779 = vst.msk [vmem:[#allocation2 + $0x10] sm:$0xff] %vm52, %v2775
    %2780 = vst.msk [vmem:[#allocation2 + $0x18] sm:$0xff] %vm52, %v2776
    // Predicated region
    $region54: #{tpu_custom_call.1} parent=1 // pred_check
      _
    $region55: #{tpu_custom_call.1} parent=1 // pred_check_branch
      %2782 = sbr.rel (0) target = $region57
    $region56: #{tpu_custom_call.1} parent=1 // pred_region
      %s2784 = ssub.s32 512, 512
      %2785 = vsyncadd [#allocation3], %s2784
      %s2786 = sshll.u32 [#allocation2], 4
      %s2787 = int_to_ptr.vmem [resolvable:$true] %s2786
      %2792 = dma.vmem_to_hbm [thread:$0]  %s2787, 512, %s13, [#allocation3], 128, 128, 8
    $region57: #{tpu_custom_call.1} parent=1 // pred_fallthru
      _
    // Predicated region
    $region58: #{tpu_custom_call.1} parent=1 // pred_check
      _
    $region59: #{tpu_custom_call.1} parent=1 // pred_check_branch
      %2794 = sbr.rel (0) target = $region61
    $region60: #{tpu_custom_call.1} parent=1 // pred_region
      %2795 = dma.done [#allocation3], 512
    $region61: #{tpu_custom_call.1} parent=1 // pred_fallthru
      _
    %2796 = vsyncpa [#allocation3], 1

</llo_original>
